<compile_context>
chip_gen: v5e
topology: v5e:2x2
jax: 0.10.0
libtpu: 0.0.40
codegen_flags: <defaults>
</compile_context>

<pallas_src>
import functools
import math

import jax
import jax.numpy as jnp
from jax.experimental import pallas as pl
from jax.experimental.pallas import tpu as pltpu

# ----- small config consistent with the module -----
BATCH = 2
SEQ = 16            # slen
D_MODEL = 128
NUM_HEADS = 4
HEAD_DIM = D_MODEL // NUM_HEADS


def mha_kernel(x_ref, wqkv_ref, bqkv_ref, wo_ref, bo_ref,
               cosq_ref, sinq_ref, cosk_ref, sink_ref, out_ref,
               *, causal, batch, seq, num_heads, head_dim):
    """Single invocation: fused [q|q_rot|k|k_rot|v] proj -> RoPE -> attention -> O proj."""
    D = num_heads * head_dim

    # One wide MXU matmul: (B*S, D) bf16 @ (D, 5D) bf16 -> f32, + f32 bias.
    qkv = jnp.dot(x_ref[...], wqkv_ref[...],
                  preferred_element_type=jnp.float32) + bqkv_ref[...]     # (B*S, 5D)

    q = qkv[:, 0 * D:1 * D]
    q_rot = qkv[:, 1 * D:2 * D]
    k = qkv[:, 2 * D:3 * D]
    k_rot = qkv[:, 3 * D:4 * D]
    v = qkv[:, 4 * D:5 * D]

    # RoPE: lane-dense f32 FMA on the full (B*S, D) tensors.
    # cos_q/sin_q already carry the 1/sqrt(head_dim) score scale.
    q_r = q * cosq_ref[...] + q_rot * sinq_ref[...]
    k_r = k * cosk_ref[...] + k_rot * sink_ref[...]

    if causal:
        row = jax.lax.broadcasted_iota(jnp.int32, (seq, seq), 0)
        col = jax.lax.broadcasted_iota(jnp.int32, (seq, seq), 1)
        mask_bias = jnp.where(col > row, jnp.float32(-1e30), jnp.float32(0.0))

    bo = bo_ref[...]                                                      # (1, D) f32
    for b in range(batch):                                                # static unroll
        r0 = b * seq
        acc = jnp.zeros((seq, D), jnp.float32)
        for h in range(num_heads):                                        # static unroll
            c0 = h * head_dim
            qh = q_r[r0:r0 + seq, c0:c0 + head_dim].astype(jnp.bfloat16)
            kh = k_r[r0:r0 + seq, c0:c0 + head_dim].astype(jnp.bfloat16)
            vh = v[r0:r0 + seq, c0:c0 + head_dim].astype(jnp.bfloat16)

            # scores = qh @ kh^T  (already scaled via cos_q/sin_q)
            sc = jax.lax.dot_general(
                qh, kh, dimension_numbers=(((1,), (1,)), ((), ())),
                preferred_element_type=jnp.float32)                        # (S, S) f32
            if causal:
                sc = sc + mask_bias

            # numerically-stable softmax in f32
            m = jnp.max(sc, axis=-1, keepdims=True)
            p = jnp.exp(sc - m)
            attn = p / jnp.sum(p, axis=-1, keepdims=True)

            oh = jnp.dot(attn.astype(jnp.bfloat16), vh,
                         preferred_element_type=jnp.float32)               # (S, HD)
            # Per-head rows of Wo^T (static, sublane-aligned slice) -> accumulate (S, D).
            acc = acc + jnp.dot(oh.astype(jnp.bfloat16),
                                wo_ref[c0:c0 + head_dim, :],
                                preferred_element_type=jnp.float32)
        out_ref[r0:r0 + seq, :] = (acc + bo).astype(out_ref.dtype)


def mha_forward(x, params, *, causal=False):
    """x: (B, S, D) float32 -> (B, S, D) float32 (self-attention path, xcross == x)."""
    # TODO(synk): cross-attention (xcross is not None) would split the fused projection into a
    #             q/q_rot matmul on x and a k/k_rot/v matmul on xcross; not implemented here.
    B, S, D = x.shape
    NH = NUM_HEADS
    HD = D // NH
    scale = 1.0 / math.sqrt(HD)

    def rotate_cols(wt):        # rotate_half applied to per-head output columns of W^T (D, D)
        w = wt.reshape(D, NH, HD)
        w1, w2 = w[..., :HD // 2], w[..., HD // 2:]
        return jnp.concatenate([-w2, w1], axis=-1).reshape(D, D)

    def rotate_bias(b):
        bb = b.reshape(NH, HD)
        b1, b2 = bb[..., :HD // 2], bb[..., HD // 2:]
        return jnp.concatenate([-b2, b1], axis=-1).reshape(D)

    # Fused weight [Wq^T | rot(Wq^T) | Wk^T | rot(Wk^T) | Wv^T], bf16 (exact: weights are
    # bf16-representable by construction).
    wqkv = jnp.concatenate(
        [params["wq_T"], rotate_cols(params["wq_T"]),
         params["wk_T"], rotate_cols(params["wk_T"]),
         params["wv_T"]], axis=1).astype(jnp.bfloat16)                     # (D, 5D)
    bqkv = jnp.concatenate(
        [params["b_q"], rotate_bias(params["b_q"]),
         params["b_k"], rotate_bias(params["b_k"]),
         params["b_v"]])[None, :].astype(jnp.float32)                      # (1, 5D)
    wo = params["wo_T"].astype(jnp.bfloat16)                               # (D, D)
    bo = params["b_o"][None, :].astype(jnp.float32)                        # (1, D)

    # Full-width (B*S, D) cos/sin caches; q-side carries the 1/sqrt(HD) score scale (f32-exact).
    cos_full = jnp.tile(params["cos"], (B, NH))                            # (B*S, D)
    sin_full = jnp.tile(params["sin"], (B, NH))
    cos_q = cos_full * scale
    sin_q = sin_full * scale

    x2 = x.reshape(B * S, D).astype(jnp.bfloat16)                          # cast in wrapper

    kernel = functools.partial(mha_kernel, causal=causal, batch=B, seq=S,
                               num_heads=NH, head_dim=HD)

    vmem = pl.BlockSpec(memory_space=pltpu.MemorySpace.VMEM)
    out = pl.pallas_call(
        kernel,
        out_shape=jax.ShapeDtypeStruct((B * S, D), jnp.float32),
        in_specs=[vmem] * 9,
        out_specs=vmem,
    )(x2, wqkv, bqkv, wo, bo, cos_q, sin_q, cos_full, sin_full)
    return out.reshape(B, S, D)


# ----------------------- pure-JAX reference (f32) -----------------------
def ref_mha(x, params, *, causal=False):
    B, S, D = x.shape
    NH, HD = NUM_HEADS, D // NUM_HEADS

    q = x @ params["wq_T"] + params["b_q"]
    k = x @ params["wk_T"] + params["b_k"]
    v = x @ params["wv_T"] + params["b_v"]

    def split_heads(t):
        return t.reshape(B, S, NH, HD).transpose(0, 2, 1, 3)               # (B, NH, S, HD)

    q, k, v = map(split_heads, (q, k, v))

    cos = params["cos"][None, None]
    sin = params["sin"][None, None]

    def rope(t):
        t1, t2 = t[..., :HD // 2], t[..., HD // 2:]
        return t * cos + jnp.concatenate([-t2, t1], axis=-1) * sin

    q = rope(q)
    k = rope(k)

    sc = jnp.einsum('bhsd,bhtd->bhst', q, k) / math.sqrt(HD)
    if causal:
        mask = jnp.triu(jnp.ones((S, S), dtype=bool), 1)
        sc = jnp.where(mask, -jnp.inf, sc)
    attn = jax.nn.softmax(sc, axis=-1)
    out = jnp.einsum('bhst,bhtd->bhsd', attn, v)
    out = out.transpose(0, 2, 1, 3).reshape(B, S, D)
    return out @ params["wo_T"] + params["b_o"]


def make_params(key):
    ks = jax.random.split(key, 8)
    sc = 1.0 / math.sqrt(D_MODEL)

    def w(k):
        # nn.Linear weight W is (out, in); we pass W^T so kernels compute x @ W^T.
        # Pre-round to bf16-representable values (stored as f32) so the wrapper's bf16 cast
        # is exact and kernel/reference use identical weight values.
        wt = jax.random.normal(k, (D_MODEL, D_MODEL), jnp.float32) * sc
        return wt.astype(jnp.bfloat16).astype(jnp.float32)

    def b(k):
        return jax.random.normal(k, (D_MODEL,), jnp.float32) * 0.02

    inv_freq = 1.0 / (10000.0 ** (jnp.arange(0, HEAD_DIM, 2, dtype=jnp.float32) / HEAD_DIM))
    t = jnp.arange(SEQ, dtype=jnp.float32)
    angles = jnp.einsum('i,j->ij', t, inv_freq)                             # (S, HD/2)
    angles = jnp.concatenate([angles, angles], axis=-1)                     # (S, HD)

    return {
        "wq_T": w(ks[0]), "wk_T": w(ks[1]), "wv_T": w(ks[2]), "wo_T": w(ks[3]),
        "b_q": b(ks[4]), "b_k": b(ks[5]), "b_v": b(ks[6]), "b_o": b(ks[7]),
        "cos": jnp.cos(angles), "sin": jnp.sin(angles),
    }


if __name__ == "__main__":
    key = jax.random.PRNGKey(0)
    kx, kp = jax.random.split(key)
    # Pre-round inputs to bf16-representable values so the wrapper's bf16 cast is exact.
    x = jax.random.normal(kx, (BATCH, SEQ, D_MODEL), jnp.float32)
    x = x.astype(jnp.bfloat16).astype(jnp.float32)
    params = make_params(kp)

    out = jax.block_until_ready(mha_forward(x, params, causal=False))
    out_causal = jax.block_until_ready(mha_forward(x, params, causal=True))

    ref = ref_mha(x, params, causal=False)
    ref_causal = ref_mha(x, params, causal=True)

    assert out.shape == (BATCH, SEQ, D_MODEL)
    assert jnp.allclose(out, ref, rtol=2e-2, atol=2e-2), "non-causal output mismatch"
    assert jnp.allclose(out_causal, ref_causal, rtol=2e-2, atol=2e-2), "causal output mismatch"

    print("KERNEL_OK")
</pallas_src>

<mosaic_0001>
module attributes {stable_mosaic.version = 11 : i64} {
  func.func @mha_kernel(%arg0: memref<32x128xbf16, #tpu.memory_space<vmem>>, %arg1: memref<128x640xbf16, #tpu.memory_space<vmem>>, %arg2: memref<1x640xf32, #tpu.memory_space<vmem>>, %arg3: memref<128x128xbf16, #tpu.memory_space<vmem>>, %arg4: memref<1x128xf32, #tpu.memory_space<vmem>>, %arg5: memref<32x128xf32, #tpu.memory_space<vmem>>, %arg6: memref<32x128xf32, #tpu.memory_space<vmem>>, %arg7: memref<32x128xf32, #tpu.memory_space<vmem>>, %arg8: memref<32x128xf32, #tpu.memory_space<vmem>>, %arg9: memref<32x128xf32, #tpu.memory_space<vmem>>) attributes {dimension_semantics = [], scalar_prefetch = 0 : i64, scratch_operands = 0 : i64, tpu.core_type = #tpu.core_type<tc>} {
    %c0 = arith.constant 0 : index
    %c0_0 = arith.constant 0 : index
    %0 = vector.load %arg0[%c0, %c0_0] : memref<32x128xbf16, #tpu.memory_space<vmem>>, vector<32x128xbf16>
    %c0_1 = arith.constant 0 : index
    %c0_2 = arith.constant 0 : index
    %1 = vector.load %arg1[%c0_1, %c0_2] : memref<128x640xbf16, #tpu.memory_space<vmem>>, vector<128x640xbf16>
    %cst = arith.constant dense<0.000000e+00> : vector<32x640xf32>
    %2 = tpu.matmul %0, %1, %cst {dimension_numbers = #tpu.dot_dimension_numbers<[1], [0], [0], [1], [0, 0, 1, 1], [], []>} : vector<32x128xbf16>, vector<128x640xbf16>, vector<32x640xf32> -> vector<32x640xf32>
    %c0_3 = arith.constant 0 : index
    %c0_4 = arith.constant 0 : index
    %3 = vector.load %arg2[%c0_3, %c0_4] : memref<1x640xf32, #tpu.memory_space<vmem>>, vector<1x640xf32>
    %4 = vector.broadcast %3 : vector<1x640xf32> to vector<32x640xf32>
    %5 = arith.addf %2, %4 : vector<32x640xf32>
    %6 = vector.extract_strided_slice %5 {offsets = [0, 0], sizes = [32, 128], strides = [1, 1]} : vector<32x640xf32> to vector<32x128xf32>
    %7 = vector.extract_strided_slice %5 {offsets = [0, 128], sizes = [32, 128], strides = [1, 1]} : vector<32x640xf32> to vector<32x128xf32>
    %8 = vector.extract_strided_slice %5 {offsets = [0, 256], sizes = [32, 128], strides = [1, 1]} : vector<32x640xf32> to vector<32x128xf32>
    %9 = vector.extract_strided_slice %5 {offsets = [0, 384], sizes = [32, 128], strides = [1, 1]} : vector<32x640xf32> to vector<32x128xf32>
    %10 = vector.extract_strided_slice %5 {offsets = [0, 512], sizes = [32, 128], strides = [1, 1]} : vector<32x640xf32> to vector<32x128xf32>
    %c0_5 = arith.constant 0 : index
    %c0_6 = arith.constant 0 : index
    %11 = vector.load %arg5[%c0_5, %c0_6] : memref<32x128xf32, #tpu.memory_space<vmem>>, vector<32x128xf32>
    %12 = arith.mulf %6, %11 : vector<32x128xf32>
    %c0_7 = arith.constant 0 : index
    %c0_8 = arith.constant 0 : index
    %13 = vector.load %arg6[%c0_7, %c0_8] : memref<32x128xf32, #tpu.memory_space<vmem>>, vector<32x128xf32>
    %14 = arith.mulf %7, %13 : vector<32x128xf32>
    %15 = arith.addf %12, %14 : vector<32x128xf32>
    %c0_9 = arith.constant 0 : index
    %c0_10 = arith.constant 0 : index
    %16 = vector.load %arg7[%c0_9, %c0_10] : memref<32x128xf32, #tpu.memory_space<vmem>>, vector<32x128xf32>
    %17 = arith.mulf %8, %16 : vector<32x128xf32>
    %c0_11 = arith.constant 0 : index
    %c0_12 = arith.constant 0 : index
    %18 = vector.load %arg8[%c0_11, %c0_12] : memref<32x128xf32, #tpu.memory_space<vmem>>, vector<32x128xf32>
    %19 = arith.mulf %9, %18 : vector<32x128xf32>
    %20 = arith.addf %17, %19 : vector<32x128xf32>
    %c0_13 = arith.constant 0 : index
    %c0_14 = arith.constant 0 : index
    %21 = vector.load %arg4[%c0_13, %c0_14] : memref<1x128xf32, #tpu.memory_space<vmem>>, vector<1x128xf32>
    %cst_15 = arith.constant 0.000000e+00 : f32
    %22 = vector.broadcast %cst_15 : f32 to vector<16x128xf32>
    %23 = vector.extract_strided_slice %15 {offsets = [0, 0], sizes = [16, 32], strides = [1, 1]} : vector<32x128xf32> to vector<16x32xf32>
    %24 = arith.truncf %23 : vector<16x32xf32> to vector<16x32xbf16>
    %25 = vector.extract_strided_slice %20 {offsets = [0, 0], sizes = [16, 32], strides = [1, 1]} : vector<32x128xf32> to vector<16x32xf32>
    %26 = arith.truncf %25 : vector<16x32xf32> to vector<16x32xbf16>
    %27 = vector.extract_strided_slice %10 {offsets = [0, 0], sizes = [16, 32], strides = [1, 1]} : vector<32x128xf32> to vector<16x32xf32>
    %28 = arith.truncf %27 : vector<16x32xf32> to vector<16x32xbf16>
    %cst_16 = arith.constant dense<0.000000e+00> : vector<16x16xf32>
    %29 = tpu.matmul %24, %26, %cst_16 {dimension_numbers = #tpu.dot_dimension_numbers<[1], [1], [0], [0], [0, 0, 1, 0], [], []>} : vector<16x32xbf16>, vector<16x32xbf16>, vector<16x16xf32> -> vector<16x16xf32>
    %cst_17 = arith.constant dense<0xFF800000> : vector<16xf32>
    %30 = vector.multi_reduction <maximumf>, %29, %cst_17 [1] : vector<16x16xf32> to vector<16xf32>
    %31 = vector.shape_cast %30 : vector<16xf32> to vector<16x1xf32>
    %32 = vector.broadcast %31 : vector<16x1xf32> to vector<16x16xf32>
    %33 = arith.subf %29, %32 : vector<16x16xf32>
    %34 = math.exp %33 : vector<16x16xf32>
    %cst_18 = arith.constant dense<0.000000e+00> : vector<16xf32>
    %35 = vector.multi_reduction <add>, %34, %cst_18 [1] : vector<16x16xf32> to vector<16xf32>
    %36 = vector.shape_cast %35 : vector<16xf32> to vector<16x1xf32>
    %37 = vector.broadcast %36 : vector<16x1xf32> to vector<16x16xf32>
    %38 = arith.divf %34, %37 : vector<16x16xf32>
    %39 = arith.truncf %38 : vector<16x16xf32> to vector<16x16xbf16>
    %cst_19 = arith.constant dense<0.000000e+00> : vector<16x32xf32>
    %40 = tpu.matmul %39, %28, %cst_19 {dimension_numbers = #tpu.dot_dimension_numbers<[1], [0], [0], [1], [0, 0, 1, 1], [], []>} : vector<16x16xbf16>, vector<16x32xbf16>, vector<16x32xf32> -> vector<16x32xf32>
    %41 = arith.truncf %40 : vector<16x32xf32> to vector<16x32xbf16>
    %c0_20 = arith.constant 0 : index
    %c0_21 = arith.constant 0 : index
    %42 = vector.load %arg3[%c0_20, %c0_21] : memref<128x128xbf16, #tpu.memory_space<vmem>>, vector<32x128xbf16>
    %cst_22 = arith.constant dense<0.000000e+00> : vector<16x128xf32>
    %43 = tpu.matmul %41, %42, %cst_22 {dimension_numbers = #tpu.dot_dimension_numbers<[1], [0], [0], [1], [0, 0, 1, 1], [], []>} : vector<16x32xbf16>, vector<32x128xbf16>, vector<16x128xf32> -> vector<16x128xf32>
    %44 = arith.addf %22, %43 : vector<16x128xf32>
    %45 = vector.extract_strided_slice %15 {offsets = [0, 32], sizes = [16, 32], strides = [1, 1]} : vector<32x128xf32> to vector<16x32xf32>
    %46 = arith.truncf %45 : vector<16x32xf32> to vector<16x32xbf16>
    %47 = vector.extract_strided_slice %20 {offsets = [0, 32], sizes = [16, 32], strides = [1, 1]} : vector<32x128xf32> to vector<16x32xf32>
    %48 = arith.truncf %47 : vector<16x32xf32> to vector<16x32xbf16>
    %49 = vector.extract_strided_slice %10 {offsets = [0, 32], sizes = [16, 32], strides = [1, 1]} : vector<32x128xf32> to vector<16x32xf32>
    %50 = arith.truncf %49 : vector<16x32xf32> to vector<16x32xbf16>
    %cst_23 = arith.constant dense<0.000000e+00> : vector<16x16xf32>
    %51 = tpu.matmul %46, %48, %cst_23 {dimension_numbers = #tpu.dot_dimension_numbers<[1], [1], [0], [0], [0, 0, 1, 0], [], []>} : vector<16x32xbf16>, vector<16x32xbf16>, vector<16x16xf32> -> vector<16x16xf32>
    %cst_24 = arith.constant dense<0xFF800000> : vector<16xf32>
    %52 = vector.multi_reduction <maximumf>, %51, %cst_24 [1] : vector<16x16xf32> to vector<16xf32>
    %53 = vector.shape_cast %52 : vector<16xf32> to vector<16x1xf32>
    %54 = vector.broadcast %53 : vector<16x1xf32> to vector<16x16xf32>
    %55 = arith.subf %51, %54 : vector<16x16xf32>
    %56 = math.exp %55 : vector<16x16xf32>
    %cst_25 = arith.constant dense<0.000000e+00> : vector<16xf32>
    %57 = vector.multi_reduction <add>, %56, %cst_25 [1] : vector<16x16xf32> to vector<16xf32>
    %58 = vector.shape_cast %57 : vector<16xf32> to vector<16x1xf32>
    %59 = vector.broadcast %58 : vector<16x1xf32> to vector<16x16xf32>
    %60 = arith.divf %56, %59 : vector<16x16xf32>
    %61 = arith.truncf %60 : vector<16x16xf32> to vector<16x16xbf16>
    %cst_26 = arith.constant dense<0.000000e+00> : vector<16x32xf32>
    %62 = tpu.matmul %61, %50, %cst_26 {dimension_numbers = #tpu.dot_dimension_numbers<[1], [0], [0], [1], [0, 0, 1, 1], [], []>} : vector<16x16xbf16>, vector<16x32xbf16>, vector<16x32xf32> -> vector<16x32xf32>
    %63 = arith.truncf %62 : vector<16x32xf32> to vector<16x32xbf16>
    %c32 = arith.constant 32 : index
    %c0_27 = arith.constant 0 : index
    %64 = vector.load %arg3[%c32, %c0_27] : memref<128x128xbf16, #tpu.memory_space<vmem>>, vector<32x128xbf16>
    %cst_28 = arith.constant dense<0.000000e+00> : vector<16x128xf32>
    %65 = tpu.matmul %63, %64, %cst_28 {dimension_numbers = #tpu.dot_dimension_numbers<[1], [0], [0], [1], [0, 0, 1, 1], [], []>} : vector<16x32xbf16>, vector<32x128xbf16>, vector<16x128xf32> -> vector<16x128xf32>
    %66 = arith.addf %44, %65 : vector<16x128xf32>
    %67 = vector.extract_strided_slice %15 {offsets = [0, 64], sizes = [16, 32], strides = [1, 1]} : vector<32x128xf32> to vector<16x32xf32>
    %68 = arith.truncf %67 : vector<16x32xf32> to vector<16x32xbf16>
    %69 = vector.extract_strided_slice %20 {offsets = [0, 64], sizes = [16, 32], strides = [1, 1]} : vector<32x128xf32> to vector<16x32xf32>
    %70 = arith.truncf %69 : vector<16x32xf32> to vector<16x32xbf16>
    %71 = vector.extract_strided_slice %10 {offsets = [0, 64], sizes = [16, 32], strides = [1, 1]} : vector<32x128xf32> to vector<16x32xf32>
    %72 = arith.truncf %71 : vector<16x32xf32> to vector<16x32xbf16>
    %cst_29 = arith.constant dense<0.000000e+00> : vector<16x16xf32>
    %73 = tpu.matmul %68, %70, %cst_29 {dimension_numbers = #tpu.dot_dimension_numbers<[1], [1], [0], [0], [0, 0, 1, 0], [], []>} : vector<16x32xbf16>, vector<16x32xbf16>, vector<16x16xf32> -> vector<16x16xf32>
    %cst_30 = arith.constant dense<0xFF800000> : vector<16xf32>
    %74 = vector.multi_reduction <maximumf>, %73, %cst_30 [1] : vector<16x16xf32> to vector<16xf32>
    %75 = vector.shape_cast %74 : vector<16xf32> to vector<16x1xf32>
    %76 = vector.broadcast %75 : vector<16x1xf32> to vector<16x16xf32>
    %77 = arith.subf %73, %76 : vector<16x16xf32>
    %78 = math.exp %77 : vector<16x16xf32>
    %cst_31 = arith.constant dense<0.000000e+00> : vector<16xf32>
    %79 = vector.multi_reduction <add>, %78, %cst_31 [1] : vector<16x16xf32> to vector<16xf32>
    %80 = vector.shape_cast %79 : vector<16xf32> to vector<16x1xf32>
    %81 = vector.broadcast %80 : vector<16x1xf32> to vector<16x16xf32>
    %82 = arith.divf %78, %81 : vector<16x16xf32>
    %83 = arith.truncf %82 : vector<16x16xf32> to vector<16x16xbf16>
    %cst_32 = arith.constant dense<0.000000e+00> : vector<16x32xf32>
    %84 = tpu.matmul %83, %72, %cst_32 {dimension_numbers = #tpu.dot_dimension_numbers<[1], [0], [0], [1], [0, 0, 1, 1], [], []>} : vector<16x16xbf16>, vector<16x32xbf16>, vector<16x32xf32> -> vector<16x32xf32>
    %85 = arith.truncf %84 : vector<16x32xf32> to vector<16x32xbf16>
    %c64 = arith.constant 64 : index
    %c0_33 = arith.constant 0 : index
    %86 = vector.load %arg3[%c64, %c0_33] : memref<128x128xbf16, #tpu.memory_space<vmem>>, vector<32x128xbf16>
    %cst_34 = arith.constant dense<0.000000e+00> : vector<16x128xf32>
    %87 = tpu.matmul %85, %86, %cst_34 {dimension_numbers = #tpu.dot_dimension_numbers<[1], [0], [0], [1], [0, 0, 1, 1], [], []>} : vector<16x32xbf16>, vector<32x128xbf16>, vector<16x128xf32> -> vector<16x128xf32>
    %88 = arith.addf %66, %87 : vector<16x128xf32>
    %89 = vector.extract_strided_slice %15 {offsets = [0, 96], sizes = [16, 32], strides = [1, 1]} : vector<32x128xf32> to vector<16x32xf32>
    %90 = arith.truncf %89 : vector<16x32xf32> to vector<16x32xbf16>
    %91 = vector.extract_strided_slice %20 {offsets = [0, 96], sizes = [16, 32], strides = [1, 1]} : vector<32x128xf32> to vector<16x32xf32>
    %92 = arith.truncf %91 : vector<16x32xf32> to vector<16x32xbf16>
    %93 = vector.extract_strided_slice %10 {offsets = [0, 96], sizes = [16, 32], strides = [1, 1]} : vector<32x128xf32> to vector<16x32xf32>
    %94 = arith.truncf %93 : vector<16x32xf32> to vector<16x32xbf16>
    %cst_35 = arith.constant dense<0.000000e+00> : vector<16x16xf32>
    %95 = tpu.matmul %90, %92, %cst_35 {dimension_numbers = #tpu.dot_dimension_numbers<[1], [1], [0], [0], [0, 0, 1, 0], [], []>} : vector<16x32xbf16>, vector<16x32xbf16>, vector<16x16xf32> -> vector<16x16xf32>
    %cst_36 = arith.constant dense<0xFF800000> : vector<16xf32>
    %96 = vector.multi_reduction <maximumf>, %95, %cst_36 [1] : vector<16x16xf32> to vector<16xf32>
    %97 = vector.shape_cast %96 : vector<16xf32> to vector<16x1xf32>
    %98 = vector.broadcast %97 : vector<16x1xf32> to vector<16x16xf32>
    %99 = arith.subf %95, %98 : vector<16x16xf32>
    %100 = math.exp %99 : vector<16x16xf32>
    %cst_37 = arith.constant dense<0.000000e+00> : vector<16xf32>
    %101 = vector.multi_reduction <add>, %100, %cst_37 [1] : vector<16x16xf32> to vector<16xf32>
    %102 = vector.shape_cast %101 : vector<16xf32> to vector<16x1xf32>
    %103 = vector.broadcast %102 : vector<16x1xf32> to vector<16x16xf32>
    %104 = arith.divf %100, %103 : vector<16x16xf32>
    %105 = arith.truncf %104 : vector<16x16xf32> to vector<16x16xbf16>
    %cst_38 = arith.constant dense<0.000000e+00> : vector<16x32xf32>
    %106 = tpu.matmul %105, %94, %cst_38 {dimension_numbers = #tpu.dot_dimension_numbers<[1], [0], [0], [1], [0, 0, 1, 1], [], []>} : vector<16x16xbf16>, vector<16x32xbf16>, vector<16x32xf32> -> vector<16x32xf32>
    %107 = arith.truncf %106 : vector<16x32xf32> to vector<16x32xbf16>
    %c96 = arith.constant 96 : index
    %c0_39 = arith.constant 0 : index
    %108 = vector.load %arg3[%c96, %c0_39] : memref<128x128xbf16, #tpu.memory_space<vmem>>, vector<32x128xbf16>
    %cst_40 = arith.constant dense<0.000000e+00> : vector<16x128xf32>
    %109 = tpu.matmul %107, %108, %cst_40 {dimension_numbers = #tpu.dot_dimension_numbers<[1], [0], [0], [1], [0, 0, 1, 1], [], []>} : vector<16x32xbf16>, vector<32x128xbf16>, vector<16x128xf32> -> vector<16x128xf32>
    %110 = arith.addf %88, %109 : vector<16x128xf32>
    %111 = vector.broadcast %21 : vector<1x128xf32> to vector<16x128xf32>
    %112 = arith.addf %110, %111 : vector<16x128xf32>
    %c0_41 = arith.constant 0 : index
    %c0_42 = arith.constant 0 : index
    %113 = vector.load %arg9[%c0_41, %c0_42] : memref<32x128xf32, #tpu.memory_space<vmem>>, vector<16x128xf32>
    tpu.vector_store %arg9[%c0_41, %c0_42], %112 {strides = array<i32>} : memref<32x128xf32, #tpu.memory_space<vmem>>, vector<16x128xf32>,
    %cst_43 = arith.constant 0.000000e+00 : f32
    %114 = vector.broadcast %cst_43 : f32 to vector<16x128xf32>
    %115 = vector.extract_strided_slice %15 {offsets = [16, 0], sizes = [16, 32], strides = [1, 1]} : vector<32x128xf32> to vector<16x32xf32>
    %116 = arith.truncf %115 : vector<16x32xf32> to vector<16x32xbf16>
    %117 = vector.extract_strided_slice %20 {offsets = [16, 0], sizes = [16, 32], strides = [1, 1]} : vector<32x128xf32> to vector<16x32xf32>
    %118 = arith.truncf %117 : vector<16x32xf32> to vector<16x32xbf16>
    %119 = vector.extract_strided_slice %10 {offsets = [16, 0], sizes = [16, 32], strides = [1, 1]} : vector<32x128xf32> to vector<16x32xf32>
    %120 = arith.truncf %119 : vector<16x32xf32> to vector<16x32xbf16>
    %cst_44 = arith.constant dense<0.000000e+00> : vector<16x16xf32>
    %121 = tpu.matmul %116, %118, %cst_44 {dimension_numbers = #tpu.dot_dimension_numbers<[1], [1], [0], [0], [0, 0, 1, 0], [], []>} : vector<16x32xbf16>, vector<16x32xbf16>, vector<16x16xf32> -> vector<16x16xf32>
    %cst_45 = arith.constant dense<0xFF800000> : vector<16xf32>
    %122 = vector.multi_reduction <maximumf>, %121, %cst_45 [1] : vector<16x16xf32> to vector<16xf32>
    %123 = vector.shape_cast %122 : vector<16xf32> to vector<16x1xf32>
    %124 = vector.broadcast %123 : vector<16x1xf32> to vector<16x16xf32>
    %125 = arith.subf %121, %124 : vector<16x16xf32>
    %126 = math.exp %125 : vector<16x16xf32>
    %cst_46 = arith.constant dense<0.000000e+00> : vector<16xf32>
    %127 = vector.multi_reduction <add>, %126, %cst_46 [1] : vector<16x16xf32> to vector<16xf32>
    %128 = vector.shape_cast %127 : vector<16xf32> to vector<16x1xf32>
    %129 = vector.broadcast %128 : vector<16x1xf32> to vector<16x16xf32>
    %130 = arith.divf %126, %129 : vector<16x16xf32>
    %131 = arith.truncf %130 : vector<16x16xf32> to vector<16x16xbf16>
    %cst_47 = arith.constant dense<0.000000e+00> : vector<16x32xf32>
    %132 = tpu.matmul %131, %120, %cst_47 {dimension_numbers = #tpu.dot_dimension_numbers<[1], [0], [0], [1], [0, 0, 1, 1], [], []>} : vector<16x16xbf16>, vector<16x32xbf16>, vector<16x32xf32> -> vector<16x32xf32>
    %133 = arith.truncf %132 : vector<16x32xf32> to vector<16x32xbf16>
    %c0_48 = arith.constant 0 : index
    %c0_49 = arith.constant 0 : index
    %134 = vector.load %arg3[%c0_48, %c0_49] : memref<128x128xbf16, #tpu.memory_space<vmem>>, vector<32x128xbf16>
    %cst_50 = arith.constant dense<0.000000e+00> : vector<16x128xf32>
    %135 = tpu.matmul %133, %134, %cst_50 {dimension_numbers = #tpu.dot_dimension_numbers<[1], [0], [0], [1], [0, 0, 1, 1], [], []>} : vector<16x32xbf16>, vector<32x128xbf16>, vector<16x128xf32> -> vector<16x128xf32>
    %136 = arith.addf %114, %135 : vector<16x128xf32>
    %137 = vector.extract_strided_slice %15 {offsets = [16, 32], sizes = [16, 32], strides = [1, 1]} : vector<32x128xf32> to vector<16x32xf32>
    %138 = arith.truncf %137 : vector<16x32xf32> to vector<16x32xbf16>
    %139 = vector.extract_strided_slice %20 {offsets = [16, 32], sizes = [16, 32], strides = [1, 1]} : vector<32x128xf32> to vector<16x32xf32>
    %140 = arith.truncf %139 : vector<16x32xf32> to vector<16x32xbf16>
    %141 = vector.extract_strided_slice %10 {offsets = [16, 32], sizes = [16, 32], strides = [1, 1]} : vector<32x128xf32> to vector<16x32xf32>
    %142 = arith.truncf %141 : vector<16x32xf32> to vector<16x32xbf16>
    %cst_51 = arith.constant dense<0.000000e+00> : vector<16x16xf32>
    %143 = tpu.matmul %138, %140, %cst_51 {dimension_numbers = #tpu.dot_dimension_numbers<[1], [1], [0], [0], [0, 0, 1, 0], [], []>} : vector<16x32xbf16>, vector<16x32xbf16>, vector<16x16xf32> -> vector<16x16xf32>
    %cst_52 = arith.constant dense<0xFF800000> : vector<16xf32>
    %144 = vector.multi_reduction <maximumf>, %143, %cst_52 [1] : vector<16x16xf32> to vector<16xf32>
    %145 = vector.shape_cast %144 : vector<16xf32> to vector<16x1xf32>
    %146 = vector.broadcast %145 : vector<16x1xf32> to vector<16x16xf32>
    %147 = arith.subf %143, %146 : vector<16x16xf32>
    %148 = math.exp %147 : vector<16x16xf32>
    %cst_53 = arith.constant dense<0.000000e+00> : vector<16xf32>
    %149 = vector.multi_reduction <add>, %148, %cst_53 [1] : vector<16x16xf32> to vector<16xf32>
    %150 = vector.shape_cast %149 : vector<16xf32> to vector<16x1xf32>
    %151 = vector.broadcast %150 : vector<16x1xf32> to vector<16x16xf32>
    %152 = arith.divf %148, %151 : vector<16x16xf32>
    %153 = arith.truncf %152 : vector<16x16xf32> to vector<16x16xbf16>
    %cst_54 = arith.constant dense<0.000000e+00> : vector<16x32xf32>
    %154 = tpu.matmul %153, %142, %cst_54 {dimension_numbers = #tpu.dot_dimension_numbers<[1], [0], [0], [1], [0, 0, 1, 1], [], []>} : vector<16x16xbf16>, vector<16x32xbf16>, vector<16x32xf32> -> vector<16x32xf32>
    %155 = arith.truncf %154 : vector<16x32xf32> to vector<16x32xbf16>
    %c32_55 = arith.constant 32 : index
    %c0_56 = arith.constant 0 : index
    %156 = vector.load %arg3[%c32_55, %c0_56] : memref<128x128xbf16, #tpu.memory_space<vmem>>, vector<32x128xbf16>
    %cst_57 = arith.constant dense<0.000000e+00> : vector<16x128xf32>
    %157 = tpu.matmul %155, %156, %cst_57 {dimension_numbers = #tpu.dot_dimension_numbers<[1], [0], [0], [1], [0, 0, 1, 1], [], []>} : vector<16x32xbf16>, vector<32x128xbf16>, vector<16x128xf32> -> vector<16x128xf32>
    %158 = arith.addf %136, %157 : vector<16x128xf32>
    %159 = vector.extract_strided_slice %15 {offsets = [16, 64], sizes = [16, 32], strides = [1, 1]} : vector<32x128xf32> to vector<16x32xf32>
    %160 = arith.truncf %159 : vector<16x32xf32> to vector<16x32xbf16>
    %161 = vector.extract_strided_slice %20 {offsets = [16, 64], sizes = [16, 32], strides = [1, 1]} : vector<32x128xf32> to vector<16x32xf32>
    %162 = arith.truncf %161 : vector<16x32xf32> to vector<16x32xbf16>
    %163 = vector.extract_strided_slice %10 {offsets = [16, 64], sizes = [16, 32], strides = [1, 1]} : vector<32x128xf32> to vector<16x32xf32>
    %164 = arith.truncf %163 : vector<16x32xf32> to vector<16x32xbf16>
    %cst_58 = arith.constant dense<0.000000e+00> : vector<16x16xf32>
    %165 = tpu.matmul %160, %162, %cst_58 {dimension_numbers = #tpu.dot_dimension_numbers<[1], [1], [0], [0], [0, 0, 1, 0], [], []>} : vector<16x32xbf16>, vector<16x32xbf16>, vector<16x16xf32> -> vector<16x16xf32>
    %cst_59 = arith.constant dense<0xFF800000> : vector<16xf32>
    %166 = vector.multi_reduction <maximumf>, %165, %cst_59 [1] : vector<16x16xf32> to vector<16xf32>
    %167 = vector.shape_cast %166 : vector<16xf32> to vector<16x1xf32>
    %168 = vector.broadcast %167 : vector<16x1xf32> to vector<16x16xf32>
    %169 = arith.subf %165, %168 : vector<16x16xf32>
    %170 = math.exp %169 : vector<16x16xf32>
    %cst_60 = arith.constant dense<0.000000e+00> : vector<16xf32>
    %171 = vector.multi_reduction <add>, %170, %cst_60 [1] : vector<16x16xf32> to vector<16xf32>
    %172 = vector.shape_cast %171 : vector<16xf32> to vector<16x1xf32>
    %173 = vector.broadcast %172 : vector<16x1xf32> to vector<16x16xf32>
    %174 = arith.divf %170, %173 : vector<16x16xf32>
    %175 = arith.truncf %174 : vector<16x16xf32> to vector<16x16xbf16>
    %cst_61 = arith.constant dense<0.000000e+00> : vector<16x32xf32>
    %176 = tpu.matmul %175, %164, %cst_61 {dimension_numbers = #tpu.dot_dimension_numbers<[1], [0], [0], [1], [0, 0, 1, 1], [], []>} : vector<16x16xbf16>, vector<16x32xbf16>, vector<16x32xf32> -> vector<16x32xf32>
    %177 = arith.truncf %176 : vector<16x32xf32> to vector<16x32xbf16>
    %c64_62 = arith.constant 64 : index
    %c0_63 = arith.constant 0 : index
    %178 = vector.load %arg3[%c64_62, %c0_63] : memref<128x128xbf16, #tpu.memory_space<vmem>>, vector<32x128xbf16>
    %cst_64 = arith.constant dense<0.000000e+00> : vector<16x128xf32>
    %179 = tpu.matmul %177, %178, %cst_64 {dimension_numbers = #tpu.dot_dimension_numbers<[1], [0], [0], [1], [0, 0, 1, 1], [], []>} : vector<16x32xbf16>, vector<32x128xbf16>, vector<16x128xf32> -> vector<16x128xf32>
    %180 = arith.addf %158, %179 : vector<16x128xf32>
    %181 = vector.extract_strided_slice %15 {offsets = [16, 96], sizes = [16, 32], strides = [1, 1]} : vector<32x128xf32> to vector<16x32xf32>
    %182 = arith.truncf %181 : vector<16x32xf32> to vector<16x32xbf16>
    %183 = vector.extract_strided_slice %20 {offsets = [16, 96], sizes = [16, 32], strides = [1, 1]} : vector<32x128xf32> to vector<16x32xf32>
    %184 = arith.truncf %183 : vector<16x32xf32> to vector<16x32xbf16>
    %185 = vector.extract_strided_slice %10 {offsets = [16, 96], sizes = [16, 32], strides = [1, 1]} : vector<32x128xf32> to vector<16x32xf32>
    %186 = arith.truncf %185 : vector<16x32xf32> to vector<16x32xbf16>
    %cst_65 = arith.constant dense<0.000000e+00> : vector<16x16xf32>
    %187 = tpu.matmul %182, %184, %cst_65 {dimension_numbers = #tpu.dot_dimension_numbers<[1], [1], [0], [0], [0, 0, 1, 0], [], []>} : vector<16x32xbf16>, vector<16x32xbf16>, vector<16x16xf32> -> vector<16x16xf32>
    %cst_66 = arith.constant dense<0xFF800000> : vector<16xf32>
    %188 = vector.multi_reduction <maximumf>, %187, %cst_66 [1] : vector<16x16xf32> to vector<16xf32>
    %189 = vector.shape_cast %188 : vector<16xf32> to vector<16x1xf32>
    %190 = vector.broadcast %189 : vector<16x1xf32> to vector<16x16xf32>
    %191 = arith.subf %187, %190 : vector<16x16xf32>
    %192 = math.exp %191 : vector<16x16xf32>
    %cst_67 = arith.constant dense<0.000000e+00> : vector<16xf32>
    %193 = vector.multi_reduction <add>, %192, %cst_67 [1] : vector<16x16xf32> to vector<16xf32>
    %194 = vector.shape_cast %193 : vector<16xf32> to vector<16x1xf32>
    %195 = vector.broadcast %194 : vector<16x1xf32> to vector<16x16xf32>
    %196 = arith.divf %192, %195 : vector<16x16xf32>
    %197 = arith.truncf %196 : vector<16x16xf32> to vector<16x16xbf16>
    %cst_68 = arith.constant dense<0.000000e+00> : vector<16x32xf32>
    %198 = tpu.matmul %197, %186, %cst_68 {dimension_numbers = #tpu.dot_dimension_numbers<[1], [0], [0], [1], [0, 0, 1, 1], [], []>} : vector<16x16xbf16>, vector<16x32xbf16>, vector<16x32xf32> -> vector<16x32xf32>
    %199 = arith.truncf %198 : vector<16x32xf32> to vector<16x32xbf16>
    %c96_69 = arith.constant 96 : index
    %c0_70 = arith.constant 0 : index
    %200 = vector.load %arg3[%c96_69, %c0_70] : memref<128x128xbf16, #tpu.memory_space<vmem>>, vector<32x128xbf16>
    %cst_71 = arith.constant dense<0.000000e+00> : vector<16x128xf32>
    %201 = tpu.matmul %199, %200, %cst_71 {dimension_numbers = #tpu.dot_dimension_numbers<[1], [0], [0], [1], [0, 0, 1, 1], [], []>} : vector<16x32xbf16>, vector<32x128xbf16>, vector<16x128xf32> -> vector<16x128xf32>
    %202 = arith.addf %180, %201 : vector<16x128xf32>
    %203 = vector.broadcast %21 : vector<1x128xf32> to vector<16x128xf32>
    %204 = arith.addf %202, %203 : vector<16x128xf32>
    %c16 = arith.constant 16 : index
    %c0_72 = arith.constant 0 : index
    %205 = vector.load %arg9[%c16, %c0_72] : memref<32x128xf32, #tpu.memory_space<vmem>>, vector<16x128xf32>
    tpu.vector_store %arg9[%c16, %c0_72], %204 {strides = array<i32>} : memref<32x128xf32, #tpu.memory_space<vmem>>, vector<16x128xf32>,
    return
  }
}

</mosaic_0001>

<llo_original>
// kernel: tpu_custom_call.1
$region0: #{tpu_custom_call.1}
  #allocation0 [shape = 'u32[]', space=smem, size = 0x4, offset = 0x4, fixed_abs, tag = 'smem constant byte address 0x4 - core index']
  #allocation1 [shape = 'u32[72,128]{1,0:T(1,128)}', space=vmem, size = 0x9000, scoped, tag = 'internal scratch']
  %s0 = inlined_call_operand.hbm [shape: bf16[32,128], index: 0, kind: input, shape index: {}]
  %s1 = inlined_call_operand.hbm [shape: bf16[128,640], index: 1, kind: input, shape index: {}]
  %s2 = inlined_call_operand.hbm [shape: f32[1,640], index: 2, kind: input, shape index: {}]
  %s3 = inlined_call_operand.hbm [shape: bf16[128,128], index: 3, kind: input, shape index: {}]
  %s4 = inlined_call_operand.vmem [shape: f32[1,128], index: 4, kind: input, shape index: {}]
  %s5 = inlined_call_operand.hbm [shape: f32[32,128], index: 5, kind: input, shape index: {}]
  %s6 = inlined_call_operand.hbm [shape: f32[32,128], index: 6, kind: input, shape index: {}]
  %s7 = inlined_call_operand.hbm [shape: f32[32,128], index: 7, kind: input, shape index: {}]
  %s8 = inlined_call_operand.hbm [shape: f32[32,128], index: 8, kind: input, shape index: {}]
  %s9 = inlined_call_operand.hbm [shape: f32[32,128], index: 9, kind: output, shape index: {}]
  %s10 = sld [smem:[#allocation0]]
  $region78: #{tpu_custom_call.1} parent=0
    _
  %s12 = ssub.s32 1, %s10
  %s13 = scalar_select 0, %s12, %s10
  $region1: #{tpu_custom_call.1} parent=0
    #allocation2 [shape = 'u8[8192]{0}', space=vmem, size = 0x2000, scoped, tag = 'input window, operand 0, single buffered']
    #allocation3 [shape = 's32[1]{0}', space=sflag, size = 0x4, scoped, tag = 'scoped memory for tpu_custom_call.1']
    #allocation4 [shape = 's32[1]{0}', space=sflag, size = 0x4, scoped, tag = 'scoped memory for tpu_custom_call.1']
    #allocation5 [shape = 'u8[163840]{0}', space=vmem, size = 0x28000, scoped, tag = 'input window, operand 1, single buffered']
    #allocation6 [shape = 's32[1]{0}', space=sflag, size = 0x4, scoped, tag = 'scoped memory for tpu_custom_call.1']
    #allocation7 [shape = 'u8[2560]{0}', space=vmem, size = 0xc00, scoped, tag = 'input window, operand 2, single buffered']
    #allocation8 [shape = 'u8[32768]{0}', space=vmem, size = 0x8000, scoped, tag = 'input window, operand 3, single buffered']
    #allocation9 [shape = 's32[1]{0}', space=sflag, size = 0x4, scoped, tag = 'scoped memory for tpu_custom_call.1']
    #allocation10 [shape = 'u8[16384]{0}', space=vmem, size = 0x4000, scoped, tag = 'input window, operand 5, single buffered']
    #allocation11 [shape = 'u8[16384]{0}', space=vmem, size = 0x4000, scoped, tag = 'input window, operand 6, single buffered']
    #allocation12 [shape = 's32[1]{0}', space=sflag, size = 0x4, scoped, tag = 'scoped memory for tpu_custom_call.1']
    #allocation13 [shape = 'u8[16384]{0}', space=vmem, size = 0x4000, scoped, tag = 'input window, operand 7, single buffered']
    #allocation14 [shape = 'u8[16384]{0}', space=vmem, size = 0x4000, scoped, tag = 'input window, operand 8, single buffered']
    #allocation15 [shape = 's32[1]{0}', space=sflag, size = 0x4, scoped, tag = 'scoped memory for tpu_custom_call.1']
    #allocation16 [shape = 'u8[16384]{0}', space=vmem, size = 0x4000, scoped, tag = 'output window, operand 0, single buffered']
    %14 = vsyncpa [#allocation3], 0
    %15 = vsyncpa [#allocation6], 0
    %16 = vsyncpa [#allocation9], 0
    %17 = vsyncpa [#allocation12], 0
    %18 = vsyncpa [#allocation15], 0
    %19 = vsyncpa [#allocation4], 0
    // Predicated region
    $region2: #{tpu_custom_call.1} parent=1 // pred_check
      _
    $region3: #{tpu_custom_call.1} parent=1 // pred_check_branch
      %21 = sbr.rel (0) target = $region5
    $region4: #{tpu_custom_call.1} parent=1 // pred_region
      %23 = vsyncadd [#allocation3], 0
      %s24 = sshll.u32 %s0, 4
      %s25 = int_to_ptr.hbm [resolvable:$true] %s24
      %s26 = sshll.u32 [#allocation2], 4
      %s27 = int_to_ptr.vmem [resolvable:$true] %s26
      %32 = dma.hbm_to_vmem [thread:$0]  %s25, 256, %s27, [#allocation3], 64, 64, 4
    $region5: #{tpu_custom_call.1} parent=1 // pred_fallthru
      _
    // Predicated region
    $region6: #{tpu_custom_call.1} parent=1 // pred_check
      _
    $region7: #{tpu_custom_call.1} parent=1 // pred_check_branch
      %34 = sbr.rel (0) target = $region9
    $region8: #{tpu_custom_call.1} parent=1 // pred_region
      %36 = vsyncadd [#allocation6], 0
      %s37 = sshll.u32 %s1, 4
      %s38 = int_to_ptr.hbm [resolvable:$true] %s37
      %s39 = sshll.u32 [#allocation5], 4
      %s40 = int_to_ptr.vmem [resolvable:$true] %s39
      %45 = dma.hbm_to_vmem [thread:$0]  %s38, 5120, %s40, [#allocation6], 320, 320, 20
    $region9: #{tpu_custom_call.1} parent=1 // pred_fallthru
      _
    // Predicated region
    $region10: #{tpu_custom_call.1} parent=1 // pred_check
      _
    $region11: #{tpu_custom_call.1} parent=1 // pred_check_branch
      %47 = sbr.rel (0) target = $region13
    $region12: #{tpu_custom_call.1} parent=1 // pred_region
      %49 = vsyncadd [#allocation6], 0
      %s51 = sshll.u32 %s2, 4
      %s52 = int_to_ptr.hbm [resolvable:$true] %s51
      %s53 = sshll.u32 [#allocation7], 4
      %s54 = int_to_ptr.vmem [resolvable:$true] %s53
      %56 = dma.hbm_to_vmem [thread:$0]  %s52, 80, %s54, [#allocation6]
    $region13: #{tpu_custom_call.1} parent=1 // pred_fallthru
      _
    // Predicated region
    $region14: #{tpu_custom_call.1} parent=1 // pred_check
      _
    $region15: #{tpu_custom_call.1} parent=1 // pred_check_branch
      %58 = sbr.rel (0) target = $region17
    $region16: #{tpu_custom_call.1} parent=1 // pred_region
      %60 = vsyncadd [#allocation9], 0
      %s61 = sshll.u32 %s3, 4
      %s62 = int_to_ptr.hbm [resolvable:$true] %s61
      %s63 = sshll.u32 [#allocation8], 4
      %s64 = int_to_ptr.vmem [resolvable:$true] %s63
      %69 = dma.hbm_to_vmem [thread:$0]  %s62, 1024, %s64, [#allocation9], 64, 64, 4
    $region17: #{tpu_custom_call.1} parent=1 // pred_fallthru
      _
    // Predicated region
    $region18: #{tpu_custom_call.1} parent=1 // pred_check
      _
    $region19: #{tpu_custom_call.1} parent=1 // pred_check_branch
      %71 = sbr.rel (0) target = $region21
    $region20: #{tpu_custom_call.1} parent=1 // pred_region
      _
    $region21: #{tpu_custom_call.1} parent=1 // pred_fallthru
      _
    // Predicated region
    $region22: #{tpu_custom_call.1} parent=1 // pred_check
      _
    $region23: #{tpu_custom_call.1} parent=1 // pred_check_branch
      %73 = sbr.rel (0) target = $region25
    $region24: #{tpu_custom_call.1} parent=1 // pred_region
      %75 = vsyncadd [#allocation9], 0
      %s76 = sshll.u32 %s5, 4
      %s77 = int_to_ptr.hbm [resolvable:$true] %s76
      %s78 = sshll.u32 [#allocation10], 4
      %s79 = int_to_ptr.vmem [resolvable:$true] %s78
      %84 = dma.hbm_to_vmem [thread:$0]  %s77, 512, %s79, [#allocation9], 128, 128, 8
    $region25: #{tpu_custom_call.1} parent=1 // pred_fallthru
      _
    // Predicated region
    $region26: #{tpu_custom_call.1} parent=1 // pred_check
      _
    $region27: #{tpu_custom_call.1} parent=1 // pred_check_branch
      %86 = sbr.rel (0) target = $region29
    $region28: #{tpu_custom_call.1} parent=1 // pred_region
      %88 = vsyncadd [#allocation12], 0
      %s89 = sshll.u32 %s6, 4
      %s90 = int_to_ptr.hbm [resolvable:$true] %s89
      %s91 = sshll.u32 [#allocation11], 4
      %s92 = int_to_ptr.vmem [resolvable:$true] %s91
      %97 = dma.hbm_to_vmem [thread:$0]  %s90, 512, %s92, [#allocation12], 128, 128, 8
    $region29: #{tpu_custom_call.1} parent=1 // pred_fallthru
      _
    // Predicated region
    $region30: #{tpu_custom_call.1} parent=1 // pred_check
      _
    $region31: #{tpu_custom_call.1} parent=1 // pred_check_branch
      %99 = sbr.rel (0) target = $region33
    $region32: #{tpu_custom_call.1} parent=1 // pred_region
      %101 = vsyncadd [#allocation12], 0
      %s102 = sshll.u32 %s7, 4
      %s103 = int_to_ptr.hbm [resolvable:$true] %s102
      %s104 = sshll.u32 [#allocation13], 4
      %s105 = int_to_ptr.vmem [resolvable:$true] %s104
      %110 = dma.hbm_to_vmem [thread:$0]  %s103, 512, %s105, [#allocation12], 128, 128, 8
    $region33: #{tpu_custom_call.1} parent=1 // pred_fallthru
      _
    // Predicated region
    $region34: #{tpu_custom_call.1} parent=1 // pred_check
      _
    $region35: #{tpu_custom_call.1} parent=1 // pred_check_branch
      %112 = sbr.rel (0) target = $region37
    $region36: #{tpu_custom_call.1} parent=1 // pred_region
      %114 = vsyncadd [#allocation15], 0
      %s115 = sshll.u32 %s8, 4
      %s116 = int_to_ptr.hbm [resolvable:$true] %s115
      %s117 = sshll.u32 [#allocation14], 4
      %s118 = int_to_ptr.vmem [resolvable:$true] %s117
      %123 = dma.hbm_to_vmem [thread:$0]  %s116, 512, %s118, [#allocation15], 128, 128, 8
    $region37: #{tpu_custom_call.1} parent=1 // pred_fallthru
      _
    // Predicated region
    $region38: #{tpu_custom_call.1} parent=1 // pred_check
      _
    $region39: #{tpu_custom_call.1} parent=1 // pred_check_branch
      %125 = sbr.rel (0) target = $region41
    $region40: #{tpu_custom_call.1} parent=1 // pred_region
      %127 = dma.done [#allocation3], 256
    $region41: #{tpu_custom_call.1} parent=1 // pred_fallthru
      _
    // Predicated region
    $region42: #{tpu_custom_call.1} parent=1 // pred_check
      _
    $region43: #{tpu_custom_call.1} parent=1 // pred_check_branch
      %129 = sbr.rel (0) target = $region45
    $region44: #{tpu_custom_call.1} parent=1 // pred_region
      %131 = dma.done [#allocation6], 5120
    $region45: #{tpu_custom_call.1} parent=1 // pred_fallthru
      _
    // Predicated region
    $region46: #{tpu_custom_call.1} parent=1 // pred_check
      _
    $region47: #{tpu_custom_call.1} parent=1 // pred_check_branch
      %133 = sbr.rel (0) target = $region49
    $region48: #{tpu_custom_call.1} parent=1 // pred_region
      %135 = dma.done [#allocation6], 80
    $region49: #{tpu_custom_call.1} parent=1 // pred_fallthru
      _
    // Predicated region
    $region50: #{tpu_custom_call.1} parent=1 // pred_check
      _
    $region51: #{tpu_custom_call.1} parent=1 // pred_check_branch
      %137 = sbr.rel (0) target = $region53
    $region52: #{tpu_custom_call.1} parent=1 // pred_region
      %139 = dma.done [#allocation9], 1024
    $region53: #{tpu_custom_call.1} parent=1 // pred_fallthru
      _
    // Predicated region
    $region54: #{tpu_custom_call.1} parent=1 // pred_check
      _
    $region55: #{tpu_custom_call.1} parent=1 // pred_check_branch
      %141 = sbr.rel (0) target = $region57
    $region56: #{tpu_custom_call.1} parent=1 // pred_region
      %143 = dma.done [#allocation9], 512
    $region57: #{tpu_custom_call.1} parent=1 // pred_fallthru
      _
    // Predicated region
    $region58: #{tpu_custom_call.1} parent=1 // pred_check
      _
    $region59: #{tpu_custom_call.1} parent=1 // pred_check_branch
      %145 = sbr.rel (0) target = $region61
    $region60: #{tpu_custom_call.1} parent=1 // pred_region
      %147 = dma.done [#allocation12], 512
    $region61: #{tpu_custom_call.1} parent=1 // pred_fallthru
      _
    // Predicated region
    $region62: #{tpu_custom_call.1} parent=1 // pred_check
      _
    $region63: #{tpu_custom_call.1} parent=1 // pred_check_branch
      %149 = sbr.rel (0) target = $region65
    $region64: #{tpu_custom_call.1} parent=1 // pred_region
      %151 = dma.done [#allocation12], 512
    $region65: #{tpu_custom_call.1} parent=1 // pred_fallthru
      _
    // Predicated region
    $region66: #{tpu_custom_call.1} parent=1 // pred_check
      _
    $region67: #{tpu_custom_call.1} parent=1 // pred_check_branch
      %153 = sbr.rel (0) target = $region69
    $region68: #{tpu_custom_call.1} parent=1 // pred_region
      %155 = dma.done [#allocation15], 512
    $region69: #{tpu_custom_call.1} parent=1 // pred_fallthru
      _
    %v157 = vld [vmem:[#allocation2] sm:$0xf]
    %v158 = vld [vmem:[#allocation2 + $0x4] sm:$0xf]
    %v159 = vld [vmem:[#allocation2 + $0x8] sm:$0xf]
    %v160 = vld [vmem:[#allocation2 + $0xc] sm:$0xf]
    %v161 = vld [vmem:[#allocation5] sm:$0xff]
    %v162 = vld [vmem:[#allocation5 + $0x8] sm:$0xff]
    %v163 = vld [vmem:[#allocation5 + $0x10] sm:$0xf]
    %v164 = vld [vmem:[#allocation5 + $0x14] sm:$0xff]
    %v165 = vld [vmem:[#allocation5 + $0x1c] sm:$0xff]
    %v166 = vld [vmem:[#allocation5 + $0x24] sm:$0xf]
    %v167 = vld [vmem:[#allocation5 + $0x28] sm:$0xff]
    %v168 = vld [vmem:[#allocation5 + $0x30] sm:$0xff]
    %v169 = vld [vmem:[#allocation5 + $0x38] sm:$0xf]
    %v170 = vld [vmem:[#allocation5 + $0x3c] sm:$0xff]
    %v171 = vld [vmem:[#allocation5 + $0x44] sm:$0xff]
    %v172 = vld [vmem:[#allocation5 + $0x4c] sm:$0xf]
    %v173 = vld [vmem:[#allocation5 + $0x50] sm:$0xff]
    %v174 = vld [vmem:[#allocation5 + $0x58] sm:$0xff]
    %v175 = vld [vmem:[#allocation5 + $0x60] sm:$0xf]
    %v176 = vld [vmem:[#allocation5 + $0x64] sm:$0xff]
    %v177 = vld [vmem:[#allocation5 + $0x6c] sm:$0xff]
    %v178 = vld [vmem:[#allocation5 + $0x74] sm:$0xf]
    %v179 = vld [vmem:[#allocation5 + $0x78] sm:$0xff]
    %v180 = vld [vmem:[#allocation5 + $0x80] sm:$0xff]
    %v181 = vld [vmem:[#allocation5 + $0x88] sm:$0xf]
    %v182 = vld [vmem:[#allocation5 + $0x8c] sm:$0xff]
    %v183 = vld [vmem:[#allocation5 + $0x94] sm:$0xff]
    %v184 = vld [vmem:[#allocation5 + $0x9c] sm:$0xf]
    %v185 = vld [vmem:[#allocation5 + $0xa0] sm:$0xff]
    %v186 = vld [vmem:[#allocation5 + $0xa8] sm:$0xff]
    %v187 = vld [vmem:[#allocation5 + $0xb0] sm:$0xf]
    %v188 = vld [vmem:[#allocation5 + $0xb4] sm:$0xff]
    %v189 = vld [vmem:[#allocation5 + $0xbc] sm:$0xff]
    %v190 = vld [vmem:[#allocation5 + $0xc4] sm:$0xf]
    %v191 = vld [vmem:[#allocation5 + $0xc8] sm:$0xff]
    %v192 = vld [vmem:[#allocation5 + $0xd0] sm:$0xff]
    %v193 = vld [vmem:[#allocation5 + $0xd8] sm:$0xf]
    %v194 = vld [vmem:[#allocation5 + $0xdc] sm:$0xff]
    %v195 = vld [vmem:[#allocation5 + $0xe4] sm:$0xff]
    %v196 = vld [vmem:[#allocation5 + $0xec] sm:$0xf]
    %v197 = vld [vmem:[#allocation5 + $0xf0] sm:$0xff]
    %v198 = vld [vmem:[#allocation5 + $0xf8] sm:$0xff]
    %v199 = vld [vmem:[#allocation5 + $0x100] sm:$0xf]
    %v200 = vld [vmem:[#allocation5 + $0x104] sm:$0xff]
    %v201 = vld [vmem:[#allocation5 + $0x10c] sm:$0xff]
    %v202 = vld [vmem:[#allocation5 + $0x114] sm:$0xf]
    %v203 = vld [vmem:[#allocation5 + $0x118] sm:$0xff]
    %v204 = vld [vmem:[#allocation5 + $0x120] sm:$0xff]
    %v205 = vld [vmem:[#allocation5 + $0x128] sm:$0xf]
    %v206 = vld [vmem:[#allocation5 + $0x12c] sm:$0xff]
    %v207 = vld [vmem:[#allocation5 + $0x134] sm:$0xff]
    %v208 = vld [vmem:[#allocation5 + $0x13c] sm:$0xf]
    %v209 = vld [vmem:[#allocation7] sm:$0x1f]
    %v211 = vperm.slane %v209, 0
    %v212 = vperm.slane %v209, 1
    %v213 = vperm.slane %v209, 2
    %v214 = vperm.slane %v209, 3
    %v215 = vperm.slane %v209, 4
    %v225 = vunpack.c.l.b16 %v157
    %v226 = vunpack.c.l.b16 %v158
    %v227 = vunpack.c.l.b16 %v159
    %v228 = vunpack.c.l.b16 %v160
    %v229 = vpack.c.b16 %v226, %v225
    %v230 = vpack.c.b16 %v228, %v227
    %v281 = vunpack.c.l.b16 %v161
    %v282 = vunpack.c.h.b16 %v161
    %v283 = vunpack.c.l.b16 %v162
    %v284 = vunpack.c.h.b16 %v162
    %v285 = vunpack.c.l.b16 %v163
    %v286 = vunpack.c.l.b16 %v164
    %v287 = vunpack.c.h.b16 %v164
    %v288 = vunpack.c.l.b16 %v165
    %v289 = vunpack.c.h.b16 %v165
    %v290 = vunpack.c.l.b16 %v166
    %v291 = vunpack.c.l.b16 %v167
    %v292 = vunpack.c.h.b16 %v167
    %v293 = vunpack.c.l.b16 %v168
    %v294 = vunpack.c.h.b16 %v168
    %v295 = vunpack.c.l.b16 %v169
    %v296 = vunpack.c.l.b16 %v170
    %v297 = vunpack.c.h.b16 %v170
    %v298 = vunpack.c.l.b16 %v171
    %v299 = vunpack.c.h.b16 %v171
    %v300 = vunpack.c.l.b16 %v172
    %v301 = vunpack.c.l.b16 %v173
    %v302 = vunpack.c.h.b16 %v173
    %v303 = vunpack.c.l.b16 %v174
    %v304 = vunpack.c.h.b16 %v174
    %v305 = vunpack.c.l.b16 %v175
    %v306 = vunpack.c.l.b16 %v176
    %v307 = vunpack.c.h.b16 %v176
    %v308 = vunpack.c.l.b16 %v177
    %v309 = vunpack.c.h.b16 %v177
    %v310 = vunpack.c.l.b16 %v178
    %v311 = vunpack.c.l.b16 %v179
    %v312 = vunpack.c.h.b16 %v179
    %v313 = vunpack.c.l.b16 %v180
    %v314 = vunpack.c.h.b16 %v180
    %v315 = vunpack.c.l.b16 %v181
    %v316 = vunpack.c.l.b16 %v182
    %v317 = vunpack.c.h.b16 %v182
    %v318 = vunpack.c.l.b16 %v183
    %v319 = vunpack.c.h.b16 %v183
    %v320 = vunpack.c.l.b16 %v184
    %v321 = vunpack.c.l.b16 %v185
    %v322 = vunpack.c.h.b16 %v185
    %v323 = vunpack.c.l.b16 %v186
    %v324 = vunpack.c.h.b16 %v186
    %v325 = vunpack.c.l.b16 %v187
    %v326 = vunpack.c.l.b16 %v188
    %v327 = vunpack.c.h.b16 %v188
    %v328 = vunpack.c.l.b16 %v189
    %v329 = vunpack.c.h.b16 %v189
    %v330 = vunpack.c.l.b16 %v190
    %v331 = vunpack.c.l.b16 %v191
    %v332 = vunpack.c.h.b16 %v191
    %v333 = vunpack.c.l.b16 %v192
    %v334 = vunpack.c.h.b16 %v192
    %v335 = vunpack.c.l.b16 %v193
    %v336 = vunpack.c.l.b16 %v194
    %v337 = vunpack.c.h.b16 %v194
    %v338 = vunpack.c.l.b16 %v195
    %v339 = vunpack.c.h.b16 %v195
    %v340 = vunpack.c.l.b16 %v196
    %v341 = vunpack.c.l.b16 %v197
    %v342 = vunpack.c.h.b16 %v197
    %v343 = vunpack.c.l.b16 %v198
    %v344 = vunpack.c.h.b16 %v198
    %v345 = vunpack.c.l.b16 %v199
    %v346 = vunpack.c.l.b16 %v200
    %v347 = vunpack.c.h.b16 %v200
    %v348 = vunpack.c.l.b16 %v201
    %v349 = vunpack.c.h.b16 %v201
    %v350 = vunpack.c.l.b16 %v202
    %v351 = vunpack.c.l.b16 %v203
    %v352 = vunpack.c.h.b16 %v203
    %v353 = vunpack.c.l.b16 %v204
    %v354 = vunpack.c.h.b16 %v204
    %v355 = vunpack.c.l.b16 %v205
    %v356 = vunpack.c.l.b16 %v206
    %v357 = vunpack.c.h.b16 %v206
    %v358 = vunpack.c.l.b16 %v207
    %v359 = vunpack.c.h.b16 %v207
    %v360 = vunpack.c.l.b16 %v208
    %v361 = vpack.c.b16 %v286, %v281
    %v362 = vpack.c.b16 %v287, %v282
    %v363 = vpack.c.b16 %v288, %v283
    %v364 = vpack.c.b16 %v289, %v284
    %v365 = vpack.c.b16 %v290, %v285
    %v366 = vpack.c.b16 %v296, %v291
    %v367 = vpack.c.b16 %v297, %v292
    %v368 = vpack.c.b16 %v298, %v293
    %v369 = vpack.c.b16 %v299, %v294
    %v370 = vpack.c.b16 %v300, %v295
    %v371 = vpack.c.b16 %v306, %v301
    %v372 = vpack.c.b16 %v307, %v302
    %v373 = vpack.c.b16 %v308, %v303
    %v374 = vpack.c.b16 %v309, %v304
    %v375 = vpack.c.b16 %v310, %v305
    %v376 = vpack.c.b16 %v316, %v311
    %v377 = vpack.c.b16 %v317, %v312
    %v378 = vpack.c.b16 %v318, %v313
    %v379 = vpack.c.b16 %v319, %v314
    %v380 = vpack.c.b16 %v320, %v315
    %v381 = vpack.c.b16 %v326, %v321
    %v382 = vpack.c.b16 %v327, %v322
    %v383 = vpack.c.b16 %v328, %v323
    %v384 = vpack.c.b16 %v329, %v324
    %v385 = vpack.c.b16 %v330, %v325
    %v386 = vpack.c.b16 %v336, %v331
    %v387 = vpack.c.b16 %v337, %v332
    %v388 = vpack.c.b16 %v338, %v333
    %v389 = vpack.c.b16 %v339, %v334
    %v390 = vpack.c.b16 %v340, %v335
    %v391 = vpack.c.b16 %v346, %v341
    %v392 = vpack.c.b16 %v347, %v342
    %v393 = vpack.c.b16 %v348, %v343
    %v394 = vpack.c.b16 %v349, %v344
    %v395 = vpack.c.b16 %v350, %v345
    %v396 = vpack.c.b16 %v356, %v351
    %v397 = vpack.c.b16 %v357, %v352
    %v398 = vpack.c.b16 %v358, %v353
    %v399 = vpack.c.b16 %v359, %v354
    %v400 = vpack.c.b16 %v360, %v355
    %441 = vmatpush.bf16.msra.mxu0 %v396
    %442 = vmatpush.bf16.msra.mxu0 %v391
    %443 = vmatpush.bf16.msra.mxu0 %v386
    %444 = vmatpush.bf16.msra.mxu0 %v381
    %445 = vmatpush.bf16.msra.mxu0 %v376
    %446 = vmatpush.bf16.msra.mxu0 %v371
    %447 = vmatpush.bf16.msra.mxu0 %v366
    %448 = vmatpush.bf16.msra.mxu0 %v361
    %449 = vmatmul.bf16.gmra.mxu0 %v229
    %v450 = vpop.f32.mrf.mxu0
    %v451 = vadd.f32 %v211, %v450
    %v452 = vpop.f32.mrf.mxu0
    %v453 = vadd.f32 %v211, %v452
    %454 = vmatmul.bf16.gmra.mxu0 %v230
    %v455 = vpop.f32.mrf.mxu0
    %v456 = vadd.f32 %v211, %v455
    %v457 = vpop.f32.mrf.mxu0
    %v458 = vadd.f32 %v211, %v457
    %459 = vdwg.mxu0
    %460 = vmatpush.bf16.msra.mxu0 %v397
    %461 = vmatpush.bf16.msra.mxu0 %v392
    %462 = vmatpush.bf16.msra.mxu0 %v387
    %463 = vmatpush.bf16.msra.mxu0 %v382
    %464 = vmatpush.bf16.msra.mxu0 %v377
    %465 = vmatpush.bf16.msra.mxu0 %v372
    %466 = vmatpush.bf16.msra.mxu0 %v367
    %467 = vmatpush.bf16.msra.mxu0 %v362
    %468 = vmatmul.bf16.gmra.mxu0 %v229
    %v469 = vpop.f32.mrf.mxu0
    %v470 = vadd.f32 %v212, %v469
    %v471 = vpop.f32.mrf.mxu0
    %v472 = vadd.f32 %v212, %v471
    %473 = vmatmul.bf16.gmra.mxu0 %v230
    %v474 = vpop.f32.mrf.mxu0
    %v475 = vadd.f32 %v212, %v474
    %v476 = vpop.f32.mrf.mxu0
    %v477 = vadd.f32 %v212, %v476
    %478 = vdwg.mxu0
    %479 = vmatpush.bf16.msra.mxu0 %v398
    %480 = vmatpush.bf16.msra.mxu0 %v393
    %481 = vmatpush.bf16.msra.mxu0 %v388
    %482 = vmatpush.bf16.msra.mxu0 %v383
    %483 = vmatpush.bf16.msra.mxu0 %v378
    %484 = vmatpush.bf16.msra.mxu0 %v373
    %485 = vmatpush.bf16.msra.mxu0 %v368
    %486 = vmatpush.bf16.msra.mxu0 %v363
    %487 = vmatmul.bf16.gmra.mxu0 %v229
    %v488 = vpop.f32.mrf.mxu0
    %v489 = vadd.f32 %v213, %v488
    %v490 = vpop.f32.mrf.mxu0
    %v491 = vadd.f32 %v213, %v490
    %492 = vmatmul.bf16.gmra.mxu0 %v230
    %v493 = vpop.f32.mrf.mxu0
    %v494 = vadd.f32 %v213, %v493
    %v495 = vpop.f32.mrf.mxu0
    %v496 = vadd.f32 %v213, %v495
    %497 = vdwg.mxu0
    %498 = vmatpush.bf16.msra.mxu0 %v399
    %499 = vmatpush.bf16.msra.mxu0 %v394
    %500 = vmatpush.bf16.msra.mxu0 %v389
    %501 = vmatpush.bf16.msra.mxu0 %v384
    %502 = vmatpush.bf16.msra.mxu0 %v379
    %503 = vmatpush.bf16.msra.mxu0 %v374
    %504 = vmatpush.bf16.msra.mxu0 %v369
    %505 = vmatpush.bf16.msra.mxu0 %v364
    %506 = vmatmul.bf16.gmra.mxu0 %v229
    %v507 = vpop.f32.mrf.mxu0
    %v508 = vadd.f32 %v214, %v507
    %v509 = vpop.f32.mrf.mxu0
    %v510 = vadd.f32 %v214, %v509
    %511 = vmatmul.bf16.gmra.mxu0 %v230
    %v512 = vpop.f32.mrf.mxu0
    %v513 = vadd.f32 %v214, %v512
    %v514 = vpop.f32.mrf.mxu0
    %v515 = vadd.f32 %v214, %v514
    %516 = vdwg.mxu0
    %517 = vmatpush.bf16.msra.mxu0 %v400
    %518 = vmatpush.bf16.msra.mxu0 %v395
    %519 = vmatpush.bf16.msra.mxu0 %v390
    %520 = vmatpush.bf16.msra.mxu0 %v385
    %521 = vmatpush.bf16.msra.mxu0 %v380
    %522 = vmatpush.bf16.msra.mxu0 %v375
    %523 = vmatpush.bf16.msra.mxu0 %v370
    %524 = vmatpush.bf16.msra.mxu0 %v365
    %525 = vmatmul.bf16.gmra.mxu0 %v229
    %v526 = vpop.f32.mrf.mxu0
    %v527 = vadd.f32 %v215, %v526
    %v528 = vpop.f32.mrf.mxu0
    %v529 = vadd.f32 %v215, %v528
    %530 = vmatmul.bf16.gmra.mxu0 %v230
    %v531 = vpop.f32.mrf.mxu0
    %v532 = vadd.f32 %v215, %v531
    %v533 = vpop.f32.mrf.mxu0
    %v534 = vadd.f32 %v215, %v533
    %535 = vdwg.mxu0
    %v536 = vld [vmem:[#allocation10] sm:$0xff]
    %v537 = vld [vmem:[#allocation10 + $0x8] sm:$0xff]
    %v538 = vld [vmem:[#allocation10 + $0x10] sm:$0xff]
    %v539 = vld [vmem:[#allocation10 + $0x18] sm:$0xff]
    %v540 = vmul.f32 %v451, %v536
    %v541 = vmul.f32 %v453, %v537
    %v542 = vmul.f32 %v456, %v538
    %v543 = vmul.f32 %v458, %v539
    %v544 = vld [vmem:[#allocation11] sm:$0xff]
    %v545 = vld [vmem:[#allocation11 + $0x8] sm:$0xff]
    %v546 = vld [vmem:[#allocation11 + $0x10] sm:$0xff]
    %v547 = vld [vmem:[#allocation11 + $0x18] sm:$0xff]
    %v548 = vmul.f32 %v470, %v544
    %v549 = vmul.f32 %v472, %v545
    %v550 = vmul.f32 %v475, %v546
    %v551 = vmul.f32 %v477, %v547
    %v552 = vadd.f32 %v540, %v548
    %v553 = vadd.f32 %v541, %v549
    %v554 = vadd.f32 %v542, %v550
    %v555 = vadd.f32 %v543, %v551
    %v556 = vld [vmem:[#allocation13] sm:$0xff]
    %v557 = vld [vmem:[#allocation13 + $0x8] sm:$0xff]
    %v558 = vld [vmem:[#allocation13 + $0x10] sm:$0xff]
    %v559 = vld [vmem:[#allocation13 + $0x18] sm:$0xff]
    %v560 = vmul.f32 %v489, %v556
    %v561 = vmul.f32 %v491, %v557
    %v562 = vmul.f32 %v494, %v558
    %v563 = vmul.f32 %v496, %v559
    %v564 = vld [vmem:[#allocation14] sm:$0xff]
    %v565 = vld [vmem:[#allocation14 + $0x8] sm:$0xff]
    %v566 = vld [vmem:[#allocation14 + $0x10] sm:$0xff]
    %v567 = vld [vmem:[#allocation14 + $0x18] sm:$0xff]
    %v568 = vmul.f32 %v508, %v564
    %v569 = vmul.f32 %v510, %v565
    %v570 = vmul.f32 %v513, %v566
    %v571 = vmul.f32 %v515, %v567
    %v572 = vadd.f32 %v560, %v568
    %v573 = vadd.f32 %v561, %v569
    %v574 = vadd.f32 %v562, %v570
    %v575 = vadd.f32 %v563, %v571
    %v576 = vld [vmem:[%s4] sm:$0x1]
    %v577 = vpack.c.bf16 %v553, %v552
    %v578 = vpack.c.bf16 %v573, %v572
    %v579 = vpack.c.bf16 %v529, %v527
    %vm580 = vcmask 261120
    %v582 = vsel %vm580, %v577, 0
    %v585 = vsel %vm580, %v578, 0
    %587 = vmatpush.bf16.xpose.msra.mxu0 0
    %588 = vmatpush.bf16.xpose.msra.mxu0 0
    %589 = vmatpush.bf16.xpose.msra.mxu0 0
    %590 = vmatpush.bf16.xpose.msra.mxu0 0
    %591 = vmatpush.bf16.xpose.msra.mxu0 0
    %592 = vmatpush.bf16.xpose.msra.mxu0 0
    %593 = vmatpush.bf16.xpose.msra.mxu0 0
    %594 = vmatpush.bf16.xpose.msra.mxu0 %v585
    %595 = vmatmul.bf16.gmra.mxu0 %v582
    %v596 = vpop.f32.mrf.mxu0
    %v597 = vadd.f32 0.0, %v596
    %v598 = vpop.f32.mrf.mxu0
    %v599 = vadd.f32 0.0, %v598
    %600 = vdwg.mxu0
    %vm601 = vcmask 130048
    %v602 = vsel %vm601, %v597, -inf
    %603 = vmax.xlane.f32.xlu0 %v602
    %v604 = vpop.xlane.xlu0 %603
    %v605 = vsel %vm601, %v599, -inf
    %606 = vmax.xlane.f32.xlu0 %v605
    %v607 = vpop.xlane.xlu0 %606
    %v608 = vsub.f32 %v597, %v604
    %v609 = vsub.f32 %v599, %v607
    %v610 = vmul.f32 %v608, 1.442695
    %v611 = vpow.pop %v610
    %v612 = vmul.f32 %v609, 1.442695
    %v613 = vpow.pop %v612
    %v614 = vsel %vm601, %v611, 0.0
    %615 = vadd.xlane.f32.xlu0 %v614
    %v616 = vpop.xlane.xlu0 %615
    %v617 = vsel %vm601, %v613, 0.0
    %618 = vadd.xlane.f32.xlu0 %v617
    %v619 = vpop.xlane.xlu0 %618
    %v620 = vrcp.pop %v616
    %v621 = vmul.f32 %v616, %v620
    %v622 = vsub.f32 1.0, %v621
    %v623 = vmul.f32 %v620, %v622
    %v624 = vadd.f32 %v620, %v623
    %vm625 = vweird.f32 %v616
    %vm626 = vweird.f32 %v620
    %vm627 = vmor %vm625, %vm626
    %v628 = vsel %vm627, %v620, %v624
    %v629 = vand.u32 2147483647, %v616
    %vm630 = vcmp.eq.f32.partialorder %v629, 8.507059e+37
    %v631 = vand.u32 %v616, 2147483648
    %v632 = vor.u32 1.1754944e-38, %v631
    %v633 = vsel %vm630, %v632, %v628
    %v634 = vmul.f32 %v611, %v633
    %v635 = vrcp.pop %v619
    %v636 = vmul.f32 %v619, %v635
    %v637 = vsub.f32 1.0, %v636
    %v638 = vmul.f32 %v635, %v637
    %v639 = vadd.f32 %v635, %v638
    %vm640 = vweird.f32 %v619
    %vm641 = vweird.f32 %v635
    %vm642 = vmor %vm640, %vm641
    %v643 = vsel %vm642, %v635, %v639
    %v644 = vand.u32 2147483647, %v619
    %vm645 = vcmp.eq.f32.partialorder %v644, 8.507059e+37
    %v646 = vand.u32 %v619, 2147483648
    %v647 = vor.u32 1.1754944e-38, %v646
    %v648 = vsel %vm645, %v647, %v643
    %v649 = vmul.f32 %v613, %v648
    %v650 = vpack.c.bf16 %v649, %v634
    %v652 = vsel %vm601, %v650, 0
    %654 = vmatpush.bf16.msra.mxu0 0
    %655 = vmatpush.bf16.msra.mxu0 0
    %656 = vmatpush.bf16.msra.mxu0 0
    %657 = vmatpush.bf16.msra.mxu0 0
    %658 = vmatpush.bf16.msra.mxu0 0
    %659 = vmatpush.bf16.msra.mxu0 0
    %660 = vmatpush.bf16.msra.mxu0 0
    %661 = vmatpush.bf16.msra.mxu0 %v579
    %662 = vmatmul.bf16.gmra.mxu0 %v652
    %v663 = vpop.f32.mrf.mxu0
    %v664 = vadd.f32 0.0, %v663
    %v665 = vpop.f32.mrf.mxu0
    %v666 = vadd.f32 0.0, %v665
    %667 = vdwg.mxu0
    %v668 = vpack.c.bf16 %v666, %v664
    %v669 = vld [vmem:[#allocation8] sm:$0xf]
    %v670 = vld [vmem:[#allocation8 + $0x4] sm:$0xf]
    %v671 = vld [vmem:[#allocation8 + $0x8] sm:$0xf]
    %v672 = vld [vmem:[#allocation8 + $0xc] sm:$0xf]
    %674 = vrot.lane.b32.xlu0 %v577, 96
    %v675 = vpop.permute.xlu0 %674
    %677 = vrot.lane.b32.xlu0 %v578, 96
    %v678 = vpop.permute.xlu0 %677
    %v680 = vsel %vm580, %v675, 0
    %v683 = vsel %vm580, %v678, 0
    %685 = vmatpush.bf16.xpose.msra.mxu0 0
    %686 = vmatpush.bf16.xpose.msra.mxu0 0
    %687 = vmatpush.bf16.xpose.msra.mxu0 0
    %688 = vmatpush.bf16.xpose.msra.mxu0 0
    %689 = vmatpush.bf16.xpose.msra.mxu0 0
    %690 = vmatpush.bf16.xpose.msra.mxu0 0
    %691 = vmatpush.bf16.xpose.msra.mxu0 0
    %692 = vmatpush.bf16.xpose.msra.mxu0 %v683
    %693 = vmatmul.bf16.gmra.mxu0 %v680
    %v694 = vpop.f32.mrf.mxu0
    %v695 = vadd.f32 0.0, %v694
    %v696 = vpop.f32.mrf.mxu0
    %v697 = vadd.f32 0.0, %v696
    %698 = vdwg.mxu0
    %v699 = vsel %vm601, %v695, -inf
    %700 = vmax.xlane.f32.xlu0 %v699
    %v701 = vpop.xlane.xlu0 %700
    %v702 = vsel %vm601, %v697, -inf
    %703 = vmax.xlane.f32.xlu0 %v702
    %v704 = vpop.xlane.xlu0 %703
    %v705 = vsub.f32 %v695, %v701
    %v706 = vsub.f32 %v697, %v704
    %v707 = vmul.f32 %v705, 1.442695
    %v708 = vpow.pop %v707
    %v709 = vmul.f32 %v706, 1.442695
    %v710 = vpow.pop %v709
    %v711 = vsel %vm601, %v708, 0.0
    %712 = vadd.xlane.f32.xlu0 %v711
    %v713 = vpop.xlane.xlu0 %712
    %v714 = vsel %vm601, %v710, 0.0
    %715 = vadd.xlane.f32.xlu0 %v714
    %v716 = vpop.xlane.xlu0 %715
    %v717 = vrcp.pop %v713
    %v718 = vmul.f32 %v713, %v717
    %v719 = vsub.f32 1.0, %v718
    %v720 = vmul.f32 %v717, %v719
    %v721 = vadd.f32 %v717, %v720
    %vm722 = vweird.f32 %v713
    %vm723 = vweird.f32 %v717
    %vm724 = vmor %vm722, %vm723
    %v725 = vsel %vm724, %v717, %v721
    %v726 = vand.u32 2147483647, %v713
    %vm727 = vcmp.eq.f32.partialorder %v726, 8.507059e+37
    %v728 = vand.u32 %v713, 2147483648
    %v729 = vor.u32 1.1754944e-38, %v728
    %v730 = vsel %vm727, %v729, %v725
    %v731 = vmul.f32 %v708, %v730
    %v732 = vrcp.pop %v716
    %v733 = vmul.f32 %v716, %v732
    %v734 = vsub.f32 1.0, %v733
    %v735 = vmul.f32 %v732, %v734
    %v736 = vadd.f32 %v732, %v735
    %vm737 = vweird.f32 %v716
    %vm738 = vweird.f32 %v732
    %vm739 = vmor %vm737, %vm738
    %v740 = vsel %vm739, %v732, %v736
    %v741 = vand.u32 2147483647, %v716
    %vm742 = vcmp.eq.f32.partialorder %v741, 8.507059e+37
    %v743 = vand.u32 %v716, 2147483648
    %v744 = vor.u32 1.1754944e-38, %v743
    %v745 = vsel %vm742, %v744, %v740
    %v746 = vmul.f32 %v710, %v745
    %v747 = vpack.c.bf16 %v746, %v731
    %749 = vrot.lane.b32.xlu0 %v579, 96
    %v750 = vpop.permute.xlu0 %749
    %v753 = vsel %vm601, %v747, 0
    %755 = vmatpush.bf16.msra.mxu0 0
    %756 = vmatpush.bf16.msra.mxu0 0
    %757 = vmatpush.bf16.msra.mxu0 0
    %758 = vmatpush.bf16.msra.mxu0 0
    %759 = vmatpush.bf16.msra.mxu0 0
    %760 = vmatpush.bf16.msra.mxu0 0
    %761 = vmatpush.bf16.msra.mxu0 0
    %762 = vmatpush.bf16.msra.mxu0 %v750
    %763 = vmatmul.bf16.gmra.mxu0 %v753
    %v764 = vpop.f32.mrf.mxu0
    %v765 = vadd.f32 0.0, %v764
    %v766 = vpop.f32.mrf.mxu0
    %v767 = vadd.f32 0.0, %v766
    %768 = vdwg.mxu0
    %v769 = vpack.c.bf16 %v767, %v765
    %v770 = vld [vmem:[#allocation8 + $0x10] sm:$0xf]
    %v771 = vld [vmem:[#allocation8 + $0x14] sm:$0xf]
    %v772 = vld [vmem:[#allocation8 + $0x18] sm:$0xf]
    %v773 = vld [vmem:[#allocation8 + $0x1c] sm:$0xf]
    %v778 = vunpack.c.l.b16 %v770
    %v779 = vunpack.c.l.b16 %v771
    %v780 = vunpack.c.l.b16 %v772
    %v781 = vunpack.c.l.b16 %v773
    %v782 = vpack.c.b16 %v779, %v778
    %v783 = vpack.c.b16 %v781, %v780
    %v787 = vsel %vm580, %v769, 0
    %789 = vmatpush.bf16.msra.mxu0 0
    %790 = vmatpush.bf16.msra.mxu0 0
    %791 = vmatpush.bf16.msra.mxu0 0
    %792 = vmatpush.bf16.msra.mxu0 0
    %793 = vmatpush.bf16.msra.mxu0 0
    %794 = vmatpush.bf16.msra.mxu0 0
    %795 = vmatpush.bf16.msra.mxu0 %v783
    %796 = vmatpush.bf16.msra.mxu0 %v782
    %797 = vmatmul.bf16.gmra.mxu0 %v787
    %v798 = vpop.f32.mrf.mxu0
    %v799 = vadd.f32 0.0, %v798
    %v800 = vpop.f32.mrf.mxu0
    %v801 = vadd.f32 0.0, %v800
    %802 = vdwg.mxu0
    %v807 = vunpack.c.l.b16 %v669
    %v808 = vunpack.c.l.b16 %v670
    %v809 = vunpack.c.l.b16 %v671
    %v810 = vunpack.c.l.b16 %v672
    %v811 = vpack.c.b16 %v808, %v807
    %v812 = vpack.c.b16 %v810, %v809
    %v816 = vsel %vm580, %v668, 0
    %818 = vmatpush.bf16.msra.mxu0 0
    %819 = vmatpush.bf16.msra.mxu0 0
    %820 = vmatpush.bf16.msra.mxu0 0
    %821 = vmatpush.bf16.msra.mxu0 0
    %822 = vmatpush.bf16.msra.mxu0 0
    %823 = vmatpush.bf16.msra.mxu0 0
    %824 = vmatpush.bf16.msra.mxu0 %v812
    %825 = vmatpush.bf16.msra.mxu0 %v811
    %826 = vmatmul.bf16.gmra.mxu0 %v816
    %v827 = vpop.f32.mrf.mxu0
    %v828 = vadd.f32 %v799, %v827
    %v829 = vpop.f32.mrf.mxu0
    %v830 = vadd.f32 %v801, %v829
    %831 = vdwg.mxu0
    %832 = vrot.lane.b32.xlu0 %v577, 64
    %v833 = vpop.permute.xlu0 %832
    %834 = vrot.lane.b32.xlu0 %v578, 64
    %v835 = vpop.permute.xlu0 %834
    %v837 = vsel %vm580, %v833, 0
    %v840 = vsel %vm580, %v835, 0
    %842 = vmatpush.bf16.xpose.msra.mxu0 0
    %843 = vmatpush.bf16.xpose.msra.mxu0 0
    %844 = vmatpush.bf16.xpose.msra.mxu0 0
    %845 = vmatpush.bf16.xpose.msra.mxu0 0
    %846 = vmatpush.bf16.xpose.msra.mxu0 0
    %847 = vmatpush.bf16.xpose.msra.mxu0 0
    %848 = vmatpush.bf16.xpose.msra.mxu0 0
    %849 = vmatpush.bf16.xpose.msra.mxu0 %v840
    %850 = vmatmul.bf16.gmra.mxu0 %v837
    %v851 = vpop.f32.mrf.mxu0
    %v852 = vadd.f32 0.0, %v851
    %v853 = vpop.f32.mrf.mxu0
    %v854 = vadd.f32 0.0, %v853
    %855 = vdwg.mxu0
    %v856 = vsel %vm601, %v852, -inf
    %857 = vmax.xlane.f32.xlu0 %v856
    %v858 = vpop.xlane.xlu0 %857
    %v859 = vsel %vm601, %v854, -inf
    %860 = vmax.xlane.f32.xlu0 %v859
    %v861 = vpop.xlane.xlu0 %860
    %v862 = vsub.f32 %v852, %v858
    %v863 = vsub.f32 %v854, %v861
    %v864 = vmul.f32 %v862, 1.442695
    %v865 = vpow.pop %v864
    %v866 = vmul.f32 %v863, 1.442695
    %v867 = vpow.pop %v866
    %v868 = vsel %vm601, %v865, 0.0
    %869 = vadd.xlane.f32.xlu0 %v868
    %v870 = vpop.xlane.xlu0 %869
    %v871 = vsel %vm601, %v867, 0.0
    %872 = vadd.xlane.f32.xlu0 %v871
    %v873 = vpop.xlane.xlu0 %872
    %v874 = vrcp.pop %v870
    %v875 = vmul.f32 %v870, %v874
    %v876 = vsub.f32 1.0, %v875
    %v877 = vmul.f32 %v874, %v876
    %v878 = vadd.f32 %v874, %v877
    %vm879 = vweird.f32 %v870
    %vm880 = vweird.f32 %v874
    %vm881 = vmor %vm879, %vm880
    %v882 = vsel %vm881, %v874, %v878
    %v883 = vand.u32 2147483647, %v870
    %vm884 = vcmp.eq.f32.partialorder %v883, 8.507059e+37
    %v885 = vand.u32 %v870, 2147483648
    %v886 = vor.u32 1.1754944e-38, %v885
    %v887 = vsel %vm884, %v886, %v882
    %v888 = vmul.f32 %v865, %v887
    %v889 = vrcp.pop %v873
    %v890 = vmul.f32 %v873, %v889
    %v891 = vsub.f32 1.0, %v890
    %v892 = vmul.f32 %v889, %v891
    %v893 = vadd.f32 %v889, %v892
    %vm894 = vweird.f32 %v873
    %vm895 = vweird.f32 %v889
    %vm896 = vmor %vm894, %vm895
    %v897 = vsel %vm896, %v889, %v893
    %v898 = vand.u32 2147483647, %v873
    %vm899 = vcmp.eq.f32.partialorder %v898, 8.507059e+37
    %v900 = vand.u32 %v873, 2147483648
    %v901 = vor.u32 1.1754944e-38, %v900
    %v902 = vsel %vm899, %v901, %v897
    %v903 = vmul.f32 %v867, %v902
    %v904 = vpack.c.bf16 %v903, %v888
    %905 = vrot.lane.b32.xlu0 %v579, 64
    %v906 = vpop.permute.xlu0 %905
    %v909 = vsel %vm601, %v904, 0
    %911 = vmatpush.bf16.msra.mxu0 0
    %912 = vmatpush.bf16.msra.mxu0 0
    %913 = vmatpush.bf16.msra.mxu0 0
    %914 = vmatpush.bf16.msra.mxu0 0
    %915 = vmatpush.bf16.msra.mxu0 0
    %916 = vmatpush.bf16.msra.mxu0 0
    %917 = vmatpush.bf16.msra.mxu0 0
    %918 = vmatpush.bf16.msra.mxu0 %v906
    %919 = vmatmul.bf16.gmra.mxu0 %v909
    %v920 = vpop.f32.mrf.mxu0
    %v921 = vadd.f32 0.0, %v920
    %v922 = vpop.f32.mrf.mxu0
    %v923 = vadd.f32 0.0, %v922
    %924 = vdwg.mxu0
    %v925 = vpack.c.bf16 %v923, %v921
    %v926 = vld [vmem:[#allocation8 + $0x20] sm:$0xf]
    %v927 = vld [vmem:[#allocation8 + $0x24] sm:$0xf]
    %v928 = vld [vmem:[#allocation8 + $0x28] sm:$0xf]
    %v929 = vld [vmem:[#allocation8 + $0x2c] sm:$0xf]
    %v934 = vunpack.c.l.b16 %v926
    %v935 = vunpack.c.l.b16 %v927
    %v936 = vunpack.c.l.b16 %v928
    %v937 = vunpack.c.l.b16 %v929
    %v938 = vpack.c.b16 %v935, %v934
    %v939 = vpack.c.b16 %v937, %v936
    %v943 = vsel %vm580, %v925, 0
    %945 = vmatpush.bf16.msra.mxu0 0
    %946 = vmatpush.bf16.msra.mxu0 0
    %947 = vmatpush.bf16.msra.mxu0 0
    %948 = vmatpush.bf16.msra.mxu0 0
    %949 = vmatpush.bf16.msra.mxu0 0
    %950 = vmatpush.bf16.msra.mxu0 0
    %951 = vmatpush.bf16.msra.mxu0 %v939
    %952 = vmatpush.bf16.msra.mxu0 %v938
    %953 = vmatmul.bf16.gmra.mxu0 %v943
    %v954 = vpop.f32.mrf.mxu0
    %v955 = vadd.f32 0.0, %v954
    %v956 = vpop.f32.mrf.mxu0
    %v957 = vadd.f32 0.0, %v956
    %958 = vdwg.mxu0
    %v959 = vadd.f32 %v828, %v955
    %v960 = vadd.f32 %v830, %v957
    %961 = vrot.lane.b32.xlu0 %v577, 32
    %v962 = vpop.permute.xlu0 %961
    %963 = vrot.lane.b32.xlu0 %v578, 32
    %v964 = vpop.permute.xlu0 %963
    %v966 = vsel %vm580, %v962, 0
    %v969 = vsel %vm580, %v964, 0
    %971 = vmatpush.bf16.xpose.msra.mxu0 0
    %972 = vmatpush.bf16.xpose.msra.mxu0 0
    %973 = vmatpush.bf16.xpose.msra.mxu0 0
    %974 = vmatpush.bf16.xpose.msra.mxu0 0
    %975 = vmatpush.bf16.xpose.msra.mxu0 0
    %976 = vmatpush.bf16.xpose.msra.mxu0 0
    %977 = vmatpush.bf16.xpose.msra.mxu0 0
    %978 = vmatpush.bf16.xpose.msra.mxu0 %v969
    %979 = vmatmul.bf16.gmra.mxu0 %v966
    %v980 = vpop.f32.mrf.mxu0
    %v981 = vadd.f32 0.0, %v980
    %v982 = vpop.f32.mrf.mxu0
    %v983 = vadd.f32 0.0, %v982
    %984 = vdwg.mxu0
    %v985 = vsel %vm601, %v981, -inf
    %986 = vmax.xlane.f32.xlu0 %v985
    %v987 = vpop.xlane.xlu0 %986
    %v988 = vsel %vm601, %v983, -inf
    %989 = vmax.xlane.f32.xlu0 %v988
    %v990 = vpop.xlane.xlu0 %989
    %v991 = vsub.f32 %v981, %v987
    %v992 = vsub.f32 %v983, %v990
    %v993 = vmul.f32 %v991, 1.442695
    %v994 = vpow.pop %v993
    %v995 = vmul.f32 %v992, 1.442695
    %v996 = vpow.pop %v995
    %v997 = vsel %vm601, %v994, 0.0
    %998 = vadd.xlane.f32.xlu0 %v997
    %v999 = vpop.xlane.xlu0 %998
    %v1000 = vsel %vm601, %v996, 0.0
    %1001 = vadd.xlane.f32.xlu0 %v1000
    %v1002 = vpop.xlane.xlu0 %1001
    %v1003 = vrcp.pop %v999
    %v1004 = vmul.f32 %v999, %v1003
    %v1005 = vsub.f32 1.0, %v1004
    %v1006 = vmul.f32 %v1003, %v1005
    %v1007 = vadd.f32 %v1003, %v1006
    %vm1008 = vweird.f32 %v999
    %vm1009 = vweird.f32 %v1003
    %vm1010 = vmor %vm1008, %vm1009
    %v1011 = vsel %vm1010, %v1003, %v1007
    %v1012 = vand.u32 2147483647, %v999
    %vm1013 = vcmp.eq.f32.partialorder %v1012, 8.507059e+37
    %v1014 = vand.u32 %v999, 2147483648
    %v1015 = vor.u32 1.1754944e-38, %v1014
    %v1016 = vsel %vm1013, %v1015, %v1011
    %v1017 = vmul.f32 %v994, %v1016
    %v1018 = vrcp.pop %v1002
    %v1019 = vmul.f32 %v1002, %v1018
    %v1020 = vsub.f32 1.0, %v1019
    %v1021 = vmul.f32 %v1018, %v1020
    %v1022 = vadd.f32 %v1018, %v1021
    %vm1023 = vweird.f32 %v1002
    %vm1024 = vweird.f32 %v1018
    %vm1025 = vmor %vm1023, %vm1024
    %v1026 = vsel %vm1025, %v1018, %v1022
    %v1027 = vand.u32 2147483647, %v1002
    %vm1028 = vcmp.eq.f32.partialorder %v1027, 8.507059e+37
    %v1029 = vand.u32 %v1002, 2147483648
    %v1030 = vor.u32 1.1754944e-38, %v1029
    %v1031 = vsel %vm1028, %v1030, %v1026
    %v1032 = vmul.f32 %v996, %v1031
    %v1033 = vpack.c.bf16 %v1032, %v1017
    %1034 = vrot.lane.b32.xlu0 %v579, 32
    %v1035 = vpop.permute.xlu0 %1034
    %v1038 = vsel %vm601, %v1033, 0
    %1040 = vmatpush.bf16.msra.mxu0 0
    %1041 = vmatpush.bf16.msra.mxu0 0
    %1042 = vmatpush.bf16.msra.mxu0 0
    %1043 = vmatpush.bf16.msra.mxu0 0
    %1044 = vmatpush.bf16.msra.mxu0 0
    %1045 = vmatpush.bf16.msra.mxu0 0
    %1046 = vmatpush.bf16.msra.mxu0 0
    %1047 = vmatpush.bf16.msra.mxu0 %v1035
    %1048 = vmatmul.bf16.gmra.mxu0 %v1038
    %v1049 = vpop.f32.mrf.mxu0
    %v1050 = vadd.f32 0.0, %v1049
    %v1051 = vpop.f32.mrf.mxu0
    %v1052 = vadd.f32 0.0, %v1051
    %1053 = vdwg.mxu0
    %v1054 = vpack.c.bf16 %v1052, %v1050
    %v1055 = vld [vmem:[#allocation8 + $0x30] sm:$0xf]
    %v1056 = vld [vmem:[#allocation8 + $0x34] sm:$0xf]
    %v1057 = vld [vmem:[#allocation8 + $0x38] sm:$0xf]
    %v1058 = vld [vmem:[#allocation8 + $0x3c] sm:$0xf]
    %v1063 = vunpack.c.l.b16 %v1055
    %v1064 = vunpack.c.l.b16 %v1056
    %v1065 = vunpack.c.l.b16 %v1057
    %v1066 = vunpack.c.l.b16 %v1058
    %v1067 = vpack.c.b16 %v1064, %v1063
    %v1068 = vpack.c.b16 %v1066, %v1065
    %v1072 = vsel %vm580, %v1054, 0
    %1074 = vmatpush.bf16.msra.mxu0 0
    %1075 = vmatpush.bf16.msra.mxu0 0
    %1076 = vmatpush.bf16.msra.mxu0 0
    %1077 = vmatpush.bf16.msra.mxu0 0
    %1078 = vmatpush.bf16.msra.mxu0 0
    %1079 = vmatpush.bf16.msra.mxu0 0
    %1080 = vmatpush.bf16.msra.mxu0 %v1068
    %1081 = vmatpush.bf16.msra.mxu0 %v1067
    %1082 = vmatmul.bf16.gmra.mxu0 %v1072
    %v1083 = vpop.f32.mrf.mxu0
    %v1084 = vadd.f32 0.0, %v1083
    %v1085 = vpop.f32.mrf.mxu0
    %v1086 = vadd.f32 0.0, %v1085
    %1087 = vdwg.mxu0
    %v1088 = vadd.f32 %v959, %v1084
    %v1089 = vadd.f32 %v960, %v1086
    %v1091 = vperm.slane %v576, 0
    %v1093 = vadd.f32 %v1088, %v1091
    %v1094 = vadd.f32 %v1089, %v1091
    %1095 = vst [vmem:[#allocation16] sm:$0xff] %v1093
    %1096 = vst [vmem:[#allocation16 + $0x8] sm:$0xff] %v1094
    %v1097 = vpack.c.bf16 %v555, %v554
    %v1098 = vpack.c.bf16 %v575, %v574
    %v1099 = vpack.c.bf16 %v534, %v532
    %v1101 = vsel %vm580, %v1097, 0
    %v1104 = vsel %vm580, %v1098, 0
    %1106 = vmatpush.bf16.xpose.msra.mxu0 0
    %1107 = vmatpush.bf16.xpose.msra.mxu0 0
    %1108 = vmatpush.bf16.xpose.msra.mxu0 0
    %1109 = vmatpush.bf16.xpose.msra.mxu0 0
    %1110 = vmatpush.bf16.xpose.msra.mxu0 0
    %1111 = vmatpush.bf16.xpose.msra.mxu0 0
    %1112 = vmatpush.bf16.xpose.msra.mxu0 0
    %1113 = vmatpush.bf16.xpose.msra.mxu0 %v1104
    %1114 = vmatmul.bf16.gmra.mxu0 %v1101
    %v1115 = vpop.f32.mrf.mxu0
    %v1116 = vadd.f32 0.0, %v1115
    %v1117 = vpop.f32.mrf.mxu0
    %v1118 = vadd.f32 0.0, %v1117
    %1119 = vdwg.mxu0
    %v1120 = vsel %vm601, %v1116, -inf
    %1121 = vmax.xlane.f32.xlu0 %v1120
    %v1122 = vpop.xlane.xlu0 %1121
    %v1123 = vsel %vm601, %v1118, -inf
    %1124 = vmax.xlane.f32.xlu0 %v1123
    %v1125 = vpop.xlane.xlu0 %1124
    %v1126 = vsub.f32 %v1116, %v1122
    %v1127 = vsub.f32 %v1118, %v1125
    %v1128 = vmul.f32 %v1126, 1.442695
    %v1129 = vpow.pop %v1128
    %v1130 = vmul.f32 %v1127, 1.442695
    %v1131 = vpow.pop %v1130
    %v1132 = vsel %vm601, %v1129, 0.0
    %1133 = vadd.xlane.f32.xlu0 %v1132
    %v1134 = vpop.xlane.xlu0 %1133
    %v1135 = vsel %vm601, %v1131, 0.0
    %1136 = vadd.xlane.f32.xlu0 %v1135
    %v1137 = vpop.xlane.xlu0 %1136
    %v1138 = vrcp.pop %v1134
    %v1139 = vmul.f32 %v1134, %v1138
    %v1140 = vsub.f32 1.0, %v1139
    %v1141 = vmul.f32 %v1138, %v1140
    %v1142 = vadd.f32 %v1138, %v1141
    %vm1143 = vweird.f32 %v1134
    %vm1144 = vweird.f32 %v1138
    %vm1145 = vmor %vm1143, %vm1144
    %v1146 = vsel %vm1145, %v1138, %v1142
    %v1147 = vand.u32 2147483647, %v1134
    %vm1148 = vcmp.eq.f32.partialorder %v1147, 8.507059e+37
    %v1149 = vand.u32 %v1134, 2147483648
    %v1150 = vor.u32 1.1754944e-38, %v1149
    %v1151 = vsel %vm1148, %v1150, %v1146
    %v1152 = vmul.f32 %v1129, %v1151
    %v1153 = vrcp.pop %v1137
    %v1154 = vmul.f32 %v1137, %v1153
    %v1155 = vsub.f32 1.0, %v1154
    %v1156 = vmul.f32 %v1153, %v1155
    %v1157 = vadd.f32 %v1153, %v1156
    %vm1158 = vweird.f32 %v1137
    %vm1159 = vweird.f32 %v1153
    %vm1160 = vmor %vm1158, %vm1159
    %v1161 = vsel %vm1160, %v1153, %v1157
    %v1162 = vand.u32 2147483647, %v1137
    %vm1163 = vcmp.eq.f32.partialorder %v1162, 8.507059e+37
    %v1164 = vand.u32 %v1137, 2147483648
    %v1165 = vor.u32 1.1754944e-38, %v1164
    %v1166 = vsel %vm1163, %v1165, %v1161
    %v1167 = vmul.f32 %v1131, %v1166
    %v1168 = vpack.c.bf16 %v1167, %v1152
    %v1170 = vsel %vm601, %v1168, 0
    %1172 = vmatpush.bf16.msra.mxu0 0
    %1173 = vmatpush.bf16.msra.mxu0 0
    %1174 = vmatpush.bf16.msra.mxu0 0
    %1175 = vmatpush.bf16.msra.mxu0 0
    %1176 = vmatpush.bf16.msra.mxu0 0
    %1177 = vmatpush.bf16.msra.mxu0 0
    %1178 = vmatpush.bf16.msra.mxu0 0
    %1179 = vmatpush.bf16.msra.mxu0 %v1099
    %1180 = vmatmul.bf16.gmra.mxu0 %v1170
    %v1181 = vpop.f32.mrf.mxu0
    %v1182 = vadd.f32 0.0, %v1181
    %v1183 = vpop.f32.mrf.mxu0
    %v1184 = vadd.f32 0.0, %v1183
    %1185 = vdwg.mxu0
    %v1186 = vpack.c.bf16 %v1184, %v1182
    %v1187 = vld [vmem:[#allocation8] sm:$0xf]
    %v1188 = vld [vmem:[#allocation8 + $0x4] sm:$0xf]
    %v1189 = vld [vmem:[#allocation8 + $0x8] sm:$0xf]
    %v1190 = vld [vmem:[#allocation8 + $0xc] sm:$0xf]
    %1192 = vrot.lane.b32.xlu0 %v1097, 96
    %v1193 = vpop.permute.xlu0 %1192
    %1195 = vrot.lane.b32.xlu0 %v1098, 96
    %v1196 = vpop.permute.xlu0 %1195
    %v1198 = vsel %vm580, %v1193, 0
    %v1201 = vsel %vm580, %v1196, 0
    %1203 = vmatpush.bf16.xpose.msra.mxu0 0
    %1204 = vmatpush.bf16.xpose.msra.mxu0 0
    %1205 = vmatpush.bf16.xpose.msra.mxu0 0
    %1206 = vmatpush.bf16.xpose.msra.mxu0 0
    %1207 = vmatpush.bf16.xpose.msra.mxu0 0
    %1208 = vmatpush.bf16.xpose.msra.mxu0 0
    %1209 = vmatpush.bf16.xpose.msra.mxu0 0
    %1210 = vmatpush.bf16.xpose.msra.mxu0 %v1201
    %1211 = vmatmul.bf16.gmra.mxu0 %v1198
    %v1212 = vpop.f32.mrf.mxu0
    %v1213 = vadd.f32 0.0, %v1212
    %v1214 = vpop.f32.mrf.mxu0
    %v1215 = vadd.f32 0.0, %v1214
    %1216 = vdwg.mxu0
    %v1217 = vsel %vm601, %v1213, -inf
    %1218 = vmax.xlane.f32.xlu0 %v1217
    %v1219 = vpop.xlane.xlu0 %1218
    %v1220 = vsel %vm601, %v1215, -inf
    %1221 = vmax.xlane.f32.xlu0 %v1220
    %v1222 = vpop.xlane.xlu0 %1221
    %v1223 = vsub.f32 %v1213, %v1219
    %v1224 = vsub.f32 %v1215, %v1222
    %v1225 = vmul.f32 %v1223, 1.442695
    %v1226 = vpow.pop %v1225
    %v1227 = vmul.f32 %v1224, 1.442695
    %v1228 = vpow.pop %v1227
    %v1229 = vsel %vm601, %v1226, 0.0
    %1230 = vadd.xlane.f32.xlu0 %v1229
    %v1231 = vpop.xlane.xlu0 %1230
    %v1232 = vsel %vm601, %v1228, 0.0
    %1233 = vadd.xlane.f32.xlu0 %v1232
    %v1234 = vpop.xlane.xlu0 %1233
    %v1235 = vrcp.pop %v1231
    %v1236 = vmul.f32 %v1231, %v1235
    %v1237 = vsub.f32 1.0, %v1236
    %v1238 = vmul.f32 %v1235, %v1237
    %v1239 = vadd.f32 %v1235, %v1238
    %vm1240 = vweird.f32 %v1231
    %vm1241 = vweird.f32 %v1235
    %vm1242 = vmor %vm1240, %vm1241
    %v1243 = vsel %vm1242, %v1235, %v1239
    %v1244 = vand.u32 2147483647, %v1231
    %vm1245 = vcmp.eq.f32.partialorder %v1244, 8.507059e+37
    %v1246 = vand.u32 %v1231, 2147483648
    %v1247 = vor.u32 1.1754944e-38, %v1246
    %v1248 = vsel %vm1245, %v1247, %v1243
    %v1249 = vmul.f32 %v1226, %v1248
    %v1250 = vrcp.pop %v1234
    %v1251 = vmul.f32 %v1234, %v1250
    %v1252 = vsub.f32 1.0, %v1251
    %v1253 = vmul.f32 %v1250, %v1252
    %v1254 = vadd.f32 %v1250, %v1253
    %vm1255 = vweird.f32 %v1234
    %vm1256 = vweird.f32 %v1250
    %vm1257 = vmor %vm1255, %vm1256
    %v1258 = vsel %vm1257, %v1250, %v1254
    %v1259 = vand.u32 2147483647, %v1234
    %vm1260 = vcmp.eq.f32.partialorder %v1259, 8.507059e+37
    %v1261 = vand.u32 %v1234, 2147483648
    %v1262 = vor.u32 1.1754944e-38, %v1261
    %v1263 = vsel %vm1260, %v1262, %v1258
    %v1264 = vmul.f32 %v1228, %v1263
    %v1265 = vpack.c.bf16 %v1264, %v1249
    %1267 = vrot.lane.b32.xlu0 %v1099, 96
    %v1268 = vpop.permute.xlu0 %1267
    %v1271 = vsel %vm601, %v1265, 0
    %1273 = vmatpush.bf16.msra.mxu0 0
    %1274 = vmatpush.bf16.msra.mxu0 0
    %1275 = vmatpush.bf16.msra.mxu0 0
    %1276 = vmatpush.bf16.msra.mxu0 0
    %1277 = vmatpush.bf16.msra.mxu0 0
    %1278 = vmatpush.bf16.msra.mxu0 0
    %1279 = vmatpush.bf16.msra.mxu0 0
    %1280 = vmatpush.bf16.msra.mxu0 %v1268
    %1281 = vmatmul.bf16.gmra.mxu0 %v1271
    %v1282 = vpop.f32.mrf.mxu0
    %v1283 = vadd.f32 0.0, %v1282
    %v1284 = vpop.f32.mrf.mxu0
    %v1285 = vadd.f32 0.0, %v1284
    %1286 = vdwg.mxu0
    %v1287 = vpack.c.bf16 %v1285, %v1283
    %v1288 = vld [vmem:[#allocation8 + $0x10] sm:$0xf]
    %v1289 = vld [vmem:[#allocation8 + $0x14] sm:$0xf]
    %v1290 = vld [vmem:[#allocation8 + $0x18] sm:$0xf]
    %v1291 = vld [vmem:[#allocation8 + $0x1c] sm:$0xf]
    %v1296 = vunpack.c.l.b16 %v1288
    %v1297 = vunpack.c.l.b16 %v1289
    %v1298 = vunpack.c.l.b16 %v1290
    %v1299 = vunpack.c.l.b16 %v1291
    %v1300 = vpack.c.b16 %v1297, %v1296
    %v1301 = vpack.c.b16 %v1299, %v1298
    %v1305 = vsel %vm580, %v1287, 0
    %1307 = vmatpush.bf16.msra.mxu0 0
    %1308 = vmatpush.bf16.msra.mxu0 0
    %1309 = vmatpush.bf16.msra.mxu0 0
    %1310 = vmatpush.bf16.msra.mxu0 0
    %1311 = vmatpush.bf16.msra.mxu0 0
    %1312 = vmatpush.bf16.msra.mxu0 0
    %1313 = vmatpush.bf16.msra.mxu0 %v1301
    %1314 = vmatpush.bf16.msra.mxu0 %v1300
    %1315 = vmatmul.bf16.gmra.mxu0 %v1305
    %v1316 = vpop.f32.mrf.mxu0
    %v1317 = vadd.f32 0.0, %v1316
    %v1318 = vpop.f32.mrf.mxu0
    %v1319 = vadd.f32 0.0, %v1318
    %1320 = vdwg.mxu0
    %v1325 = vunpack.c.l.b16 %v1187
    %v1326 = vunpack.c.l.b16 %v1188
    %v1327 = vunpack.c.l.b16 %v1189
    %v1328 = vunpack.c.l.b16 %v1190
    %v1329 = vpack.c.b16 %v1326, %v1325
    %v1330 = vpack.c.b16 %v1328, %v1327
    %v1334 = vsel %vm580, %v1186, 0
    %1336 = vmatpush.bf16.msra.mxu0 0
    %1337 = vmatpush.bf16.msra.mxu0 0
    %1338 = vmatpush.bf16.msra.mxu0 0
    %1339 = vmatpush.bf16.msra.mxu0 0
    %1340 = vmatpush.bf16.msra.mxu0 0
    %1341 = vmatpush.bf16.msra.mxu0 0
    %1342 = vmatpush.bf16.msra.mxu0 %v1330
    %1343 = vmatpush.bf16.msra.mxu0 %v1329
    %1344 = vmatmul.bf16.gmra.mxu0 %v1334
    %v1345 = vpop.f32.mrf.mxu0
    %v1346 = vadd.f32 %v1317, %v1345
    %v1347 = vpop.f32.mrf.mxu0
    %v1348 = vadd.f32 %v1319, %v1347
    %1349 = vdwg.mxu0
    %1350 = vrot.lane.b32.xlu0 %v1097, 64
    %v1351 = vpop.permute.xlu0 %1350
    %1352 = vrot.lane.b32.xlu0 %v1098, 64
    %v1353 = vpop.permute.xlu0 %1352
    %v1355 = vsel %vm580, %v1351, 0
    %v1358 = vsel %vm580, %v1353, 0
    %1360 = vmatpush.bf16.xpose.msra.mxu0 0
    %1361 = vmatpush.bf16.xpose.msra.mxu0 0
    %1362 = vmatpush.bf16.xpose.msra.mxu0 0
    %1363 = vmatpush.bf16.xpose.msra.mxu0 0
    %1364 = vmatpush.bf16.xpose.msra.mxu0 0
    %1365 = vmatpush.bf16.xpose.msra.mxu0 0
    %1366 = vmatpush.bf16.xpose.msra.mxu0 0
    %1367 = vmatpush.bf16.xpose.msra.mxu0 %v1358
    %1368 = vmatmul.bf16.gmra.mxu0 %v1355
    %v1369 = vpop.f32.mrf.mxu0
    %v1370 = vadd.f32 0.0, %v1369
    %v1371 = vpop.f32.mrf.mxu0
    %v1372 = vadd.f32 0.0, %v1371
    %1373 = vdwg.mxu0
    %v1374 = vsel %vm601, %v1370, -inf
    %1375 = vmax.xlane.f32.xlu0 %v1374
    %v1376 = vpop.xlane.xlu0 %1375
    %v1377 = vsel %vm601, %v1372, -inf
    %1378 = vmax.xlane.f32.xlu0 %v1377
    %v1379 = vpop.xlane.xlu0 %1378
    %v1380 = vsub.f32 %v1370, %v1376
    %v1381 = vsub.f32 %v1372, %v1379
    %v1382 = vmul.f32 %v1380, 1.442695
    %v1383 = vpow.pop %v1382
    %v1384 = vmul.f32 %v1381, 1.442695
    %v1385 = vpow.pop %v1384
    %v1386 = vsel %vm601, %v1383, 0.0
    %1387 = vadd.xlane.f32.xlu0 %v1386
    %v1388 = vpop.xlane.xlu0 %1387
    %v1389 = vsel %vm601, %v1385, 0.0
    %1390 = vadd.xlane.f32.xlu0 %v1389
    %v1391 = vpop.xlane.xlu0 %1390
    %v1392 = vrcp.pop %v1388
    %v1393 = vmul.f32 %v1388, %v1392
    %v1394 = vsub.f32 1.0, %v1393
    %v1395 = vmul.f32 %v1392, %v1394
    %v1396 = vadd.f32 %v1392, %v1395
    %vm1397 = vweird.f32 %v1388
    %vm1398 = vweird.f32 %v1392
    %vm1399 = vmor %vm1397, %vm1398
    %v1400 = vsel %vm1399, %v1392, %v1396
    %v1401 = vand.u32 2147483647, %v1388
    %vm1402 = vcmp.eq.f32.partialorder %v1401, 8.507059e+37
    %v1403 = vand.u32 %v1388, 2147483648
    %v1404 = vor.u32 1.1754944e-38, %v1403
    %v1405 = vsel %vm1402, %v1404, %v1400
    %v1406 = vmul.f32 %v1383, %v1405
    %v1407 = vrcp.pop %v1391
    %v1408 = vmul.f32 %v1391, %v1407
    %v1409 = vsub.f32 1.0, %v1408
    %v1410 = vmul.f32 %v1407, %v1409
    %v1411 = vadd.f32 %v1407, %v1410
    %vm1412 = vweird.f32 %v1391
    %vm1413 = vweird.f32 %v1407
    %vm1414 = vmor %vm1412, %vm1413
    %v1415 = vsel %vm1414, %v1407, %v1411
    %v1416 = vand.u32 2147483647, %v1391
    %vm1417 = vcmp.eq.f32.partialorder %v1416, 8.507059e+37
    %v1418 = vand.u32 %v1391, 2147483648
    %v1419 = vor.u32 1.1754944e-38, %v1418
    %v1420 = vsel %vm1417, %v1419, %v1415
    %v1421 = vmul.f32 %v1385, %v1420
    %v1422 = vpack.c.bf16 %v1421, %v1406
    %1423 = vrot.lane.b32.xlu0 %v1099, 64
    %v1424 = vpop.permute.xlu0 %1423
    %v1427 = vsel %vm601, %v1422, 0
    %1429 = vmatpush.bf16.msra.mxu0 0
    %1430 = vmatpush.bf16.msra.mxu0 0
    %1431 = vmatpush.bf16.msra.mxu0 0
    %1432 = vmatpush.bf16.msra.mxu0 0
    %1433 = vmatpush.bf16.msra.mxu0 0
    %1434 = vmatpush.bf16.msra.mxu0 0
    %1435 = vmatpush.bf16.msra.mxu0 0
    %1436 = vmatpush.bf16.msra.mxu0 %v1424
    %1437 = vmatmul.bf16.gmra.mxu0 %v1427
    %v1438 = vpop.f32.mrf.mxu0
    %v1439 = vadd.f32 0.0, %v1438
    %v1440 = vpop.f32.mrf.mxu0
    %v1441 = vadd.f32 0.0, %v1440
    %1442 = vdwg.mxu0
    %v1443 = vpack.c.bf16 %v1441, %v1439
    %v1444 = vld [vmem:[#allocation8 + $0x20] sm:$0xf]
    %v1445 = vld [vmem:[#allocation8 + $0x24] sm:$0xf]
    %v1446 = vld [vmem:[#allocation8 + $0x28] sm:$0xf]
    %v1447 = vld [vmem:[#allocation8 + $0x2c] sm:$0xf]
    %v1452 = vunpack.c.l.b16 %v1444
    %v1453 = vunpack.c.l.b16 %v1445
    %v1454 = vunpack.c.l.b16 %v1446
    %v1455 = vunpack.c.l.b16 %v1447
    %v1456 = vpack.c.b16 %v1453, %v1452
    %v1457 = vpack.c.b16 %v1455, %v1454
    %v1461 = vsel %vm580, %v1443, 0
    %1463 = vmatpush.bf16.msra.mxu0 0
    %1464 = vmatpush.bf16.msra.mxu0 0
    %1465 = vmatpush.bf16.msra.mxu0 0
    %1466 = vmatpush.bf16.msra.mxu0 0
    %1467 = vmatpush.bf16.msra.mxu0 0
    %1468 = vmatpush.bf16.msra.mxu0 0
    %1469 = vmatpush.bf16.msra.mxu0 %v1457
    %1470 = vmatpush.bf16.msra.mxu0 %v1456
    %1471 = vmatmul.bf16.gmra.mxu0 %v1461
    %v1472 = vpop.f32.mrf.mxu0
    %v1473 = vadd.f32 0.0, %v1472
    %v1474 = vpop.f32.mrf.mxu0
    %v1475 = vadd.f32 0.0, %v1474
    %1476 = vdwg.mxu0
    %v1477 = vadd.f32 %v1346, %v1473
    %v1478 = vadd.f32 %v1348, %v1475
    %1479 = vrot.lane.b32.xlu0 %v1097, 32
    %v1480 = vpop.permute.xlu0 %1479
    %1481 = vrot.lane.b32.xlu0 %v1098, 32
    %v1482 = vpop.permute.xlu0 %1481
    %v1484 = vsel %vm580, %v1480, 0
    %v1487 = vsel %vm580, %v1482, 0
    %1489 = vmatpush.bf16.xpose.msra.mxu0 0
    %1490 = vmatpush.bf16.xpose.msra.mxu0 0
    %1491 = vmatpush.bf16.xpose.msra.mxu0 0
    %1492 = vmatpush.bf16.xpose.msra.mxu0 0
    %1493 = vmatpush.bf16.xpose.msra.mxu0 0
    %1494 = vmatpush.bf16.xpose.msra.mxu0 0
    %1495 = vmatpush.bf16.xpose.msra.mxu0 0
    %1496 = vmatpush.bf16.xpose.msra.mxu0 %v1487
    %1497 = vmatmul.bf16.gmra.mxu0 %v1484
    %v1498 = vpop.f32.mrf.mxu0
    %v1499 = vadd.f32 0.0, %v1498
    %v1500 = vpop.f32.mrf.mxu0
    %v1501 = vadd.f32 0.0, %v1500
    %1502 = vdwg.mxu0
    %v1503 = vsel %vm601, %v1499, -inf
    %1504 = vmax.xlane.f32.xlu0 %v1503
    %v1505 = vpop.xlane.xlu0 %1504
    %v1506 = vsel %vm601, %v1501, -inf
    %1507 = vmax.xlane.f32.xlu0 %v1506
    %v1508 = vpop.xlane.xlu0 %1507
    %v1509 = vsub.f32 %v1499, %v1505
    %v1510 = vsub.f32 %v1501, %v1508
    %v1511 = vmul.f32 %v1509, 1.442695
    %v1512 = vpow.pop %v1511
    %v1513 = vmul.f32 %v1510, 1.442695
    %v1514 = vpow.pop %v1513
    %v1515 = vsel %vm601, %v1512, 0.0
    %1516 = vadd.xlane.f32.xlu0 %v1515
    %v1517 = vpop.xlane.xlu0 %1516
    %v1518 = vsel %vm601, %v1514, 0.0
    %1519 = vadd.xlane.f32.xlu0 %v1518
    %v1520 = vpop.xlane.xlu0 %1519
    %v1521 = vrcp.pop %v1517
    %v1522 = vmul.f32 %v1517, %v1521
    %v1523 = vsub.f32 1.0, %v1522
    %v1524 = vmul.f32 %v1521, %v1523
    %v1525 = vadd.f32 %v1521, %v1524
    %vm1526 = vweird.f32 %v1517
    %vm1527 = vweird.f32 %v1521
    %vm1528 = vmor %vm1526, %vm1527
    %v1529 = vsel %vm1528, %v1521, %v1525
    %v1530 = vand.u32 2147483647, %v1517
    %vm1531 = vcmp.eq.f32.partialorder %v1530, 8.507059e+37
    %v1532 = vand.u32 %v1517, 2147483648
    %v1533 = vor.u32 1.1754944e-38, %v1532
    %v1534 = vsel %vm1531, %v1533, %v1529
    %v1535 = vmul.f32 %v1512, %v1534
    %v1536 = vrcp.pop %v1520
    %v1537 = vmul.f32 %v1520, %v1536
    %v1538 = vsub.f32 1.0, %v1537
    %v1539 = vmul.f32 %v1536, %v1538
    %v1540 = vadd.f32 %v1536, %v1539
    %vm1541 = vweird.f32 %v1520
    %vm1542 = vweird.f32 %v1536
    %vm1543 = vmor %vm1541, %vm1542
    %v1544 = vsel %vm1543, %v1536, %v1540
    %v1545 = vand.u32 2147483647, %v1520
    %vm1546 = vcmp.eq.f32.partialorder %v1545, 8.507059e+37
    %v1547 = vand.u32 %v1520, 2147483648
    %v1548 = vor.u32 1.1754944e-38, %v1547
    %v1549 = vsel %vm1546, %v1548, %v1544
    %v1550 = vmul.f32 %v1514, %v1549
    %v1551 = vpack.c.bf16 %v1550, %v1535
    %1552 = vrot.lane.b32.xlu0 %v1099, 32
    %v1553 = vpop.permute.xlu0 %1552
    %v1556 = vsel %vm601, %v1551, 0
    %1558 = vmatpush.bf16.msra.mxu0 0
    %1559 = vmatpush.bf16.msra.mxu0 0
    %1560 = vmatpush.bf16.msra.mxu0 0
    %1561 = vmatpush.bf16.msra.mxu0 0
    %1562 = vmatpush.bf16.msra.mxu0 0
    %1563 = vmatpush.bf16.msra.mxu0 0
    %1564 = vmatpush.bf16.msra.mxu0 0
    %1565 = vmatpush.bf16.msra.mxu0 %v1553
    %1566 = vmatmul.bf16.gmra.mxu0 %v1556
    %v1567 = vpop.f32.mrf.mxu0
    %v1568 = vadd.f32 0.0, %v1567
    %v1569 = vpop.f32.mrf.mxu0
    %v1570 = vadd.f32 0.0, %v1569
    %1571 = vdwg.mxu0
    %v1572 = vpack.c.bf16 %v1570, %v1568
    %v1573 = vld [vmem:[#allocation8 + $0x30] sm:$0xf]
    %v1574 = vld [vmem:[#allocation8 + $0x34] sm:$0xf]
    %v1575 = vld [vmem:[#allocation8 + $0x38] sm:$0xf]
    %v1576 = vld [vmem:[#allocation8 + $0x3c] sm:$0xf]
    %v1581 = vunpack.c.l.b16 %v1573
    %v1582 = vunpack.c.l.b16 %v1574
    %v1583 = vunpack.c.l.b16 %v1575
    %v1584 = vunpack.c.l.b16 %v1576
    %v1585 = vpack.c.b16 %v1582, %v1581
    %v1586 = vpack.c.b16 %v1584, %v1583
    %v1590 = vsel %vm580, %v1572, 0
    %1592 = vmatpush.bf16.msra.mxu0 0
    %1593 = vmatpush.bf16.msra.mxu0 0
    %1594 = vmatpush.bf16.msra.mxu0 0
    %1595 = vmatpush.bf16.msra.mxu0 0
    %1596 = vmatpush.bf16.msra.mxu0 0
    %1597 = vmatpush.bf16.msra.mxu0 0
    %1598 = vmatpush.bf16.msra.mxu0 %v1586
    %1599 = vmatpush.bf16.msra.mxu0 %v1585
    %1600 = vmatmul.bf16.gmra.mxu0 %v1590
    %v1601 = vpop.f32.mrf.mxu0
    %v1602 = vadd.f32 0.0, %v1601
    %v1603 = vpop.f32.mrf.mxu0
    %v1604 = vadd.f32 0.0, %v1603
    %1605 = vdwg.mxu0
    %v1606 = vadd.f32 %v1477, %v1602
    %v1607 = vadd.f32 %v1478, %v1604
    %v1608 = vadd.f32 %v1606, %v1091
    %v1609 = vadd.f32 %v1607, %v1091
    %1610 = vst [vmem:[#allocation16 + $0x10] sm:$0xff] %v1608
    %1611 = vst [vmem:[#allocation16 + $0x18] sm:$0xff] %v1609
    // Predicated region
    $region70: #{tpu_custom_call.1} parent=1 // pred_check
      _
    $region71: #{tpu_custom_call.1} parent=1 // pred_check_branch
      %1613 = sbr.rel (0) target = $region73
    $region72: #{tpu_custom_call.1} parent=1 // pred_region
      %1615 = vsyncadd [#allocation4], 0
      %s1616 = sshll.u32 [#allocation16], 4
      %s1617 = int_to_ptr.vmem [resolvable:$true] %s1616
      %s1618 = sshll.u32 %s9, 4
      %s1619 = int_to_ptr.hbm [resolvable:$true] %s1618
      %1624 = dma.vmem_to_hbm [thread:$0]  %s1617, 512, %s1619, [#allocation4], 128, 128, 8
    $region73: #{tpu_custom_call.1} parent=1 // pred_fallthru
      _
    // Predicated region
    $region74: #{tpu_custom_call.1} parent=1 // pred_check
      _
    $region75: #{tpu_custom_call.1} parent=1 // pred_check_branch
      %1626 = sbr.rel (0) target = $region77
    $region76: #{tpu_custom_call.1} parent=1 // pred_region
      %1628 = dma.done [#allocation4], 512
    $region77: #{tpu_custom_call.1} parent=1 // pred_fallthru
      _
    %1629 = vsyncpa [#allocation3], 1
    %1630 = vsyncpa [#allocation6], 1
    %1631 = vsyncpa [#allocation9], 1
    %1632 = vsyncpa [#allocation12], 1
    %1633 = vsyncpa [#allocation15], 1
    %1634 = vsyncpa [#allocation4], 1

</llo_original>
